<compile_context>
chip_gen: v5e
topology: v5e:2x2
jax: 0.10.0
libtpu: 0.0.40
codegen_flags: <defaults>
</compile_context>

<pallas_src>
import jax
import jax.numpy as jnp
from jax import lax
from jax.experimental import pallas as pl
from jax.experimental.pallas import tpu as pltpu

INPUT_SIZE = 8
HIDDEN = 64                 # H
NUM_LAYERS = 2
OUTPUT = 3
OUT_PAD = 128               # lane-padded fc output width
EPS = 1e-5                  # torch.nn.LayerNorm default
MM_DTYPE = jnp.bfloat16     # MXU input dtype (f32 accumulation)

# Packed gate-column layout (units of H): 0=r0 1=r1 2=z0 3=z1 4=ni0 5=ni1 6=nh0 7=nh1
#   r/z columns hold the SUM of input-side and hidden-side pre-activations,
#   ni*/nh* are kept separate because of PyTorch's n = tanh(gi_n + r*(gh_n + b_hn)).


def _fused_wavefront_gates(g, hcat, H):
    """One combined wavefront step for both layers, in concatenated lane space.

    g    : (B, 8H) f32 pre-activations, columns [r0|r1|z0|z1|ni0|ni1|nh0|nh1]
    hcat : (B, 2H) f32 carried state [h1 | h2]
    returns new (B, 2H) state [h1' | h2'] (PyTorch GRU cell semantics per half).
    """
    HC = 2 * H
    rz = jax.nn.sigmoid(g[:, :2 * HC])            # one EUP pass for r0,r1,z0,z1
    r = rz[:, :HC]
    z = rz[:, HC:]
    n = jnp.tanh(g[:, 2 * HC:3 * HC] + r * g[:, 3 * HC:])
    return (1.0 - z) * n + z * hcat


def path_gru_kernel(x_ref, wi_ref, wh_ref, bias_ref, ln_ref, fcw_ref, fcb_ref,
                    out_ref):
    B = out_ref.shape[0]
    TB, _ = x_ref.shape
    T = TB // B
    H = HIDDEN
    HC = 2 * H

    wh = wh_ref[...]                              # (2H, 8H) bf16, packed per header

    # ---- Hoisted layer-0 input projection + ALL biases, time-major:
    #      one (T*B, D) @ (D, 8H) matmul + one broadcast add.
    addend = jnp.dot(x_ref[...].astype(wi_ref.dtype), wi_ref[...],
                     preferred_element_type=jnp.float32) + bias_ref[...]
    # Per-step static row slices (independent of the recurrence -> off the chain).
    addends = [addend[s * B:(s + 1) * B, :] for s in range(T)]

    # ---- Step 0: layer-0 only (hcat == 0, so the recurrence matmul is exactly 0).
    lane = lax.broadcasted_iota(jnp.int32, (1, HC), 1)
    mask_l0 = (lane < H).astype(jnp.float32)      # keep [h1 | 0]
    hcat = _fused_wavefront_gates(addends[0], jnp.zeros((B, HC), jnp.float32), H)
    hcat = hcat * mask_l0

    # ---- Wavefront steps 1..T-1: layer-0 advances to t, layer-1 to t-1,
    #      one fused (B,128)@(128,512) matmul per step. Statically unrolled.
    for s in range(1, T):
        g = addends[s] + jnp.dot(hcat.astype(wh.dtype), wh,
                                 preferred_element_type=jnp.float32)
        hcat = _fused_wavefront_gates(g, hcat, H)

    # ---- Final step: layer-1 advances to T-1. The layer-0 half is computed but
    #      discarded; the layer-1 columns of addends[T-1] are exactly the
    #      time-independent layer-1 biases, so reuse that row block.
    g = addends[T - 1] + jnp.dot(hcat.astype(wh.dtype), wh,
                                 preferred_element_type=jnp.float32)
    hcat = _fused_wavefront_gates(g, hcat, H)
    h2 = hcat[:, H:HC]                            # GRU output at the last timestep

    # ---- LayerNorm over hidden dim (biased variance, torch semantics), f32.
    mean = jnp.mean(h2, axis=-1, keepdims=True)
    var = jnp.mean((h2 - mean) ** 2, axis=-1, keepdims=True)
    normed = ((h2 - mean) * lax.rsqrt(var + EPS) * ln_ref[0:1, :]
              + ln_ref[1:2, :])

    # ---- Lane-padded Linear epilogue: (B, H) @ (H, 128) + (1, 128).
    out_ref[...] = (jnp.dot(normed, fcw_ref[...], preferred_element_type=jnp.float32)
                    + fcb_ref[...])


def path_gru(x, params):
    """x: (B, T, INPUT_SIZE) batch_first float32 -> (B, OUTPUT) float32."""
    B, T, D = x.shape
    assert D == INPUT_SIZE
    # Time-major flatten happens on the XLA/HBM side (free relative to the kernel).
    x_tm = jnp.transpose(x, (1, 0, 2)).reshape(T * B, D)

    args = (
        x_tm,
        params["wi_big"].astype(MM_DTYPE),
        params["wh_big"].astype(MM_DTYPE),
        params["bias_big"],
        params["ln_gb"],
        params["fc_w_pad"],
        params["fc_b_pad"],
    )

    vmem = pl.BlockSpec(memory_space=pltpu.MemorySpace.VMEM)
    out_pad = pl.pallas_call(
        path_gru_kernel,
        out_shape=jax.ShapeDtypeStruct((B, OUT_PAD), jnp.float32),
        in_specs=[vmem] * len(args),
        out_specs=vmem,
    )(*args)
    return out_pad[:, :OUTPUT]


def init_params(key):
    """Deterministic synthetic init, U(-1/sqrt(H), 1/sqrt(H)) like PyTorch GRU.

    Raw PyTorch-layout tensors are kept under "raw" (used by the independent
    reference); the packed/fused tensors (f32; the wrapper casts the two weight
    slabs to bf16) feed the kernel.
    """
    H = HIDDEN
    bound = 1.0 / (H ** 0.5)
    ks = jax.random.split(key, 10)

    def u(k, shape):
        return jax.random.uniform(k, shape, jnp.float32, -bound, bound)

    raw = {
        "w_ih_l0": u(ks[0], (3 * H, INPUT_SIZE)),
        "w_hh_l0": u(ks[1], (3 * H, H)),
        "b_ih_l0": u(ks[2], (3 * H,)),
        "b_hh_l0": u(ks[3], (3 * H,)),
        "w_ih_l1": u(ks[4], (3 * H, H)),
        "w_hh_l1": u(ks[5], (3 * H, H)),
        "b_ih_l1": u(ks[6], (3 * H,)),
        "b_hh_l1": u(ks[7], (3 * H,)),
        "ln_g": jnp.ones((H,), jnp.float32),
        "ln_b": jnp.zeros((H,), jnp.float32),
        "fc_w": u(ks[8], (OUTPUT, H)),
        "fc_b": u(ks[9], (OUTPUT,)),
    }

    # Transposed (in_dim, 3H) views, gate columns [r | z | n].
    wi0 = jnp.transpose(raw["w_ih_l0"])   # (D, 3H)
    wh0 = jnp.transpose(raw["w_hh_l0"])   # (H, 3H)
    wi1 = jnp.transpose(raw["w_ih_l1"])   # (H, 3H)
    wh1 = jnp.transpose(raw["w_hh_l1"])   # (H, 3H)

    GW = 8 * H  # packed gate width: [r0|r1|z0|z1|ni0|ni1|nh0|nh1]

    # Layer-0 input-side weights go into the hoisted addend matmul.
    wi_big = jnp.zeros((INPUT_SIZE, GW), jnp.float32)
    wi_big = wi_big.at[:, 0 * H:1 * H].set(wi0[:, 0 * H:1 * H])   # r0
    wi_big = wi_big.at[:, 2 * H:3 * H].set(wi0[:, 1 * H:2 * H])   # z0
    wi_big = wi_big.at[:, 4 * H:5 * H].set(wi0[:, 2 * H:3 * H])   # ni0

    # Recurrence weight over the concatenated state [h1 | h2] (rows 0..H-1 | H..2H-1).
    wh_big = jnp.zeros((2 * H, GW), jnp.float32)
    wh_big = wh_big.at[0:H, 0 * H:1 * H].set(wh0[:, 0 * H:1 * H])   # r0  <- Wh0_r
    wh_big = wh_big.at[0:H, 1 * H:2 * H].set(wi1[:, 0 * H:1 * H])   # r1  <- Wi1_r
    wh_big = wh_big.at[0:H, 2 * H:3 * H].set(wh0[:, 1 * H:2 * H])   # z0  <- Wh0_z
    wh_big = wh_big.at[0:H, 3 * H:4 * H].set(wi1[:, 1 * H:2 * H])   # z1  <- Wi1_z
    wh_big = wh_big.at[0:H, 5 * H:6 * H].set(wi1[:, 2 * H:3 * H])   # ni1 <- Wi1_n
    wh_big = wh_big.at[0:H, 6 * H:7 * H].set(wh0[:, 2 * H:3 * H])   # nh0 <- Wh0_n
    wh_big = wh_big.at[H:2 * H, 1 * H:2 * H].set(wh1[:, 0 * H:1 * H])   # r1  <- Wh1_r
    wh_big = wh_big.at[H:2 * H, 3 * H:4 * H].set(wh1[:, 1 * H:2 * H])   # z1  <- Wh1_z
    wh_big = wh_big.at[H:2 * H, 7 * H:8 * H].set(wh1[:, 2 * H:3 * H])   # nh1 <- Wh1_n

    # All biases packed once (r/z biases pre-combined, n-gate biases kept split).
    bi0, bh0 = raw["b_ih_l0"], raw["b_hh_l0"]
    bi1, bh1 = raw["b_ih_l1"], raw["b_hh_l1"]
    bias_big = jnp.concatenate([
        bi0[0 * H:1 * H] + bh0[0 * H:1 * H],   # r0
        bi1[0 * H:1 * H] + bh1[0 * H:1 * H],   # r1
        bi0[1 * H:2 * H] + bh0[1 * H:2 * H],   # z0
        bi1[1 * H:2 * H] + bh1[1 * H:2 * H],   # z1
        bi0[2 * H:3 * H],                      # ni0 (= b_in, layer 0)
        bi1[2 * H:3 * H],                      # ni1
        bh0[2 * H:3 * H],                      # nh0 (= b_hn, layer 0)
        bh1[2 * H:3 * H],                      # nh1
    ]).reshape(1, GW)

    ln_gb = jnp.stack([raw["ln_g"], raw["ln_b"]], axis=0)           # (2, H)
    fc_w_pad = jnp.zeros((H, OUT_PAD), jnp.float32).at[:, :OUTPUT].set(
        jnp.transpose(raw["fc_w"]))
    fc_b_pad = jnp.zeros((1, OUT_PAD), jnp.float32).at[:, :OUTPUT].set(raw["fc_b"])

    return {
        "wi_big": wi_big, "wh_big": wh_big, "bias_big": bias_big,
        "ln_gb": ln_gb, "fc_w_pad": fc_w_pad, "fc_b_pad": fc_b_pad,
        "raw": raw,
    }


def path_gru_fused_ref(x, params, mm_dtype=jnp.float32):
    """Pure-JAX mirror of the kernel's math (same packed layout / matmul dtype)."""
    B, T, D = x.shape
    H = HIDDEN
    HC = 2 * H
    wi = params["wi_big"].astype(mm_dtype)
    wh = params["wh_big"].astype(mm_dtype)

    x_tm = jnp.transpose(x, (1, 0, 2)).reshape(T * B, D)
    addend = jnp.dot(x_tm.astype(mm_dtype), wi,
                     preferred_element_type=jnp.float32) + params["bias_big"]

    mask_l0 = (jnp.arange(HC)[None, :] < H).astype(jnp.float32)
    hcat = _fused_wavefront_gates(addend[0:B], jnp.zeros((B, HC), jnp.float32), H)
    hcat = hcat * mask_l0
    for s in range(1, T):
        g = addend[s * B:(s + 1) * B] + jnp.dot(hcat.astype(mm_dtype), wh,
                                                preferred_element_type=jnp.float32)
        hcat = _fused_wavefront_gates(g, hcat, H)
    g = addend[(T - 1) * B:T * B] + jnp.dot(hcat.astype(mm_dtype), wh,
                                            preferred_element_type=jnp.float32)
    hcat = _fused_wavefront_gates(g, hcat, H)
    h2 = hcat[:, H:HC]

    mean = jnp.mean(h2, axis=-1, keepdims=True)
    var = jnp.mean((h2 - mean) ** 2, axis=-1, keepdims=True)
    normed = ((h2 - mean) * lax.rsqrt(var + EPS) * params["ln_gb"][0:1, :]
              + params["ln_gb"][1:2, :])
    out = jnp.dot(normed, params["fc_w_pad"]) + params["fc_b_pad"]
    return out[:, :OUTPUT]


def path_gru_torch_ref(x, params):
    """Independent f32 reference written straight from the PyTorch GRU equations
    (unfused per-gate weights) — validates the packing / wavefront algebra."""
    raw = params["raw"]
    B, T, _ = x.shape
    H = HIDDEN
    layer_in = x
    h = jnp.zeros((B, H), jnp.float32)
    for layer in range(NUM_LAYERS):
        w_ih = raw[f"w_ih_l{layer}"]; w_hh = raw[f"w_hh_l{layer}"]
        b_ih = raw[f"b_ih_l{layer}"]; b_hh = raw[f"b_hh_l{layer}"]
        h = jnp.zeros((B, H), jnp.float32)
        outs = []
        for t in range(T):
            x_t = layer_in[:, t, :]
            gi = x_t @ jnp.transpose(w_ih) + b_ih
            gh = h @ jnp.transpose(w_hh) + b_hh
            r = jax.nn.sigmoid(gi[:, :H] + gh[:, :H])
            z = jax.nn.sigmoid(gi[:, H:2 * H] + gh[:, H:2 * H])
            n = jnp.tanh(gi[:, 2 * H:] + r * gh[:, 2 * H:])
            h = (1.0 - z) * n + z * h
            outs.append(h)
        layer_in = jnp.stack(outs, axis=1)   # (inference: no inter-layer dropout)
    h_last = h
    mean = jnp.mean(h_last, axis=-1, keepdims=True)
    var = jnp.mean((h_last - mean) ** 2, axis=-1, keepdims=True)
    normed = (h_last - mean) * lax.rsqrt(var + EPS) * raw["ln_g"] + raw["ln_b"]
    return normed @ jnp.transpose(raw["fc_w"]) + raw["fc_b"]


if __name__ == "__main__":
    key = jax.random.PRNGKey(0)
    k_params, k_x = jax.random.split(key)

    B, T = 2, 8  # batch=2, seq=8, input feature size = 8 (module default)
    params = init_params(k_params)
    x = jax.random.normal(k_x, (B, T, INPUT_SIZE), jnp.float32)

    out = jax.block_until_ready(path_gru(x, params))
    assert out.shape == (B, OUTPUT)

    # 1) Packing/wavefront algebra check: f32 packed reference vs PyTorch-equation ref.
    ref_fused_f32 = jax.block_until_ready(path_gru_fused_ref(x, params, jnp.float32))
    ref_torch = jax.block_until_ready(path_gru_torch_ref(x, params))
    assert jnp.allclose(ref_fused_f32, ref_torch, atol=1e-4, rtol=1e-4), (
        ref_fused_f32, ref_torch)

    # 2) Tight check: kernel vs pure-JAX mirror with identical numerics (bf16 MXU
    #    inputs, f32 accumulation / gate math).
    ref_same = jax.block_until_ready(path_gru_fused_ref(x, params, MM_DTYPE))
    assert jnp.allclose(out, ref_same, atol=2e-3, rtol=2e-3), (out, ref_same)

    # 3) Loose sanity check vs the pure-f32 PyTorch-equation reference
    #    (differences are bf16 weight/activation rounding only).
    assert jnp.allclose(out, ref_torch, atol=1e-1, rtol=1e-1), (out, ref_torch)

    print("KERNEL_OK")
</pallas_src>

<mosaic_0001>
module attributes {stable_mosaic.version = 11 : i64} {
  func.func @path_gru_kernel(%arg0: memref<16x8xf32, #tpu.memory_space<vmem>>, %arg1: memref<8x512xbf16, #tpu.memory_space<vmem>>, %arg2: memref<128x512xbf16, #tpu.memory_space<vmem>>, %arg3: memref<1x512xf32, #tpu.memory_space<vmem>>, %arg4: memref<2x64xf32, #tpu.memory_space<vmem>>, %arg5: memref<64x128xf32, #tpu.memory_space<vmem>>, %arg6: memref<1x128xf32, #tpu.memory_space<vmem>>, %arg7: memref<2x128xf32, #tpu.memory_space<vmem>>) attributes {dimension_semantics = [], scalar_prefetch = 0 : i64, scratch_operands = 0 : i64, tpu.core_type = #tpu.core_type<tc>} {
    %c0 = arith.constant 0 : index
    %c0_0 = arith.constant 0 : index
    %0 = vector.load %arg2[%c0, %c0_0] : memref<128x512xbf16, #tpu.memory_space<vmem>>, vector<128x512xbf16>
    %c0_1 = arith.constant 0 : index
    %c0_2 = arith.constant 0 : index
    %1 = vector.load %arg0[%c0_1, %c0_2] : memref<16x8xf32, #tpu.memory_space<vmem>>, vector<16x8xf32>
    %2 = arith.truncf %1 : vector<16x8xf32> to vector<16x8xbf16>
    %c0_3 = arith.constant 0 : index
    %c0_4 = arith.constant 0 : index
    %3 = vector.load %arg1[%c0_3, %c0_4] : memref<8x512xbf16, #tpu.memory_space<vmem>>, vector<8x512xbf16>
    %cst = arith.constant dense<0.000000e+00> : vector<16x512xf32>
    %4 = tpu.matmul %2, %3, %cst {dimension_numbers = #tpu.dot_dimension_numbers<[1], [0], [0], [1], [0, 0, 1, 1], [], []>} : vector<16x8xbf16>, vector<8x512xbf16>, vector<16x512xf32> -> vector<16x512xf32>
    %c0_5 = arith.constant 0 : index
    %c0_6 = arith.constant 0 : index
    %5 = vector.load %arg3[%c0_5, %c0_6] : memref<1x512xf32, #tpu.memory_space<vmem>>, vector<1x512xf32>
    %6 = vector.broadcast %5 : vector<1x512xf32> to vector<16x512xf32>
    %7 = arith.addf %4, %6 : vector<16x512xf32>
    %8 = vector.extract_strided_slice %7 {offsets = [0, 0], sizes = [2, 512], strides = [1, 1]} : vector<16x512xf32> to vector<2x512xf32>
    %9 = vector.extract_strided_slice %7 {offsets = [2, 0], sizes = [2, 512], strides = [1, 1]} : vector<16x512xf32> to vector<2x512xf32>
    %10 = vector.extract_strided_slice %7 {offsets = [4, 0], sizes = [2, 512], strides = [1, 1]} : vector<16x512xf32> to vector<2x512xf32>
    %11 = vector.extract_strided_slice %7 {offsets = [6, 0], sizes = [2, 512], strides = [1, 1]} : vector<16x512xf32> to vector<2x512xf32>
    %12 = vector.extract_strided_slice %7 {offsets = [8, 0], sizes = [2, 512], strides = [1, 1]} : vector<16x512xf32> to vector<2x512xf32>
    %13 = vector.extract_strided_slice %7 {offsets = [10, 0], sizes = [2, 512], strides = [1, 1]} : vector<16x512xf32> to vector<2x512xf32>
    %14 = vector.extract_strided_slice %7 {offsets = [12, 0], sizes = [2, 512], strides = [1, 1]} : vector<16x512xf32> to vector<2x512xf32>
    %15 = vector.extract_strided_slice %7 {offsets = [14, 0], sizes = [2, 512], strides = [1, 1]} : vector<16x512xf32> to vector<2x512xf32>
    %16 = tpu.iota {dimensions = array<i32: 1>} : vector<1x128xi32>
    %c64_i32 = arith.constant 64 : i32
    %17 = vector.broadcast %c64_i32 : i32 to vector<1x128xi32>
    %18 = arith.cmpi slt, %16, %17 : vector<1x128xi32>
    %19 = arith.extui %18 : vector<1x128xi1> to vector<1x128xi32>
    %20 = arith.sitofp %19 : vector<1x128xi32> to vector<1x128xf32>
    %cst_7 = arith.constant 0.000000e+00 : f32
    %21 = vector.broadcast %cst_7 : f32 to vector<2x128xf32>
    %22 = vector.extract_strided_slice %8 {offsets = [0, 0], sizes = [2, 256], strides = [1, 1]} : vector<2x512xf32> to vector<2x256xf32>
    %23 = arith.negf %22 : vector<2x256xf32>
    %24 = math.exp %23 : vector<2x256xf32>
    %cst_8 = arith.constant 1.000000e+00 : f32
    %25 = vector.broadcast %cst_8 : f32 to vector<2x256xf32>
    %26 = arith.addf %25, %24 : vector<2x256xf32>
    %27 = arith.divf %25, %26 : vector<2x256xf32>
    %28 = vector.extract_strided_slice %27 {offsets = [0, 0], sizes = [2, 128], strides = [1, 1]} : vector<2x256xf32> to vector<2x128xf32>
    %29 = vector.extract_strided_slice %27 {offsets = [0, 128], sizes = [2, 128], strides = [1, 1]} : vector<2x256xf32> to vector<2x128xf32>
    %30 = vector.extract_strided_slice %8 {offsets = [0, 256], sizes = [2, 128], strides = [1, 1]} : vector<2x512xf32> to vector<2x128xf32>
    %31 = vector.extract_strided_slice %8 {offsets = [0, 384], sizes = [2, 128], strides = [1, 1]} : vector<2x512xf32> to vector<2x128xf32>
    %32 = arith.mulf %28, %31 : vector<2x128xf32>
    %33 = arith.addf %30, %32 : vector<2x128xf32>
    %34 = math.tanh %33 : vector<2x128xf32>
    %cst_9 = arith.constant 1.000000e+00 : f32
    %35 = vector.broadcast %cst_9 : f32 to vector<2x128xf32>
    %36 = arith.subf %35, %29 : vector<2x128xf32>
    %37 = arith.mulf %36, %34 : vector<2x128xf32>
    %38 = arith.mulf %29, %21 : vector<2x128xf32>
    %39 = arith.addf %37, %38 : vector<2x128xf32>
    %40 = vector.broadcast %20 : vector<1x128xf32> to vector<2x128xf32>
    %41 = arith.mulf %39, %40 : vector<2x128xf32>
    %42 = arith.truncf %41 : vector<2x128xf32> to vector<2x128xbf16>
    %cst_10 = arith.constant dense<0.000000e+00> : vector<2x512xf32>
    %43 = tpu.matmul %42, %0, %cst_10 {dimension_numbers = #tpu.dot_dimension_numbers<[1], [0], [0], [1], [0, 0, 1, 1], [], []>} : vector<2x128xbf16>, vector<128x512xbf16>, vector<2x512xf32> -> vector<2x512xf32>
    %44 = arith.addf %9, %43 : vector<2x512xf32>
    %45 = vector.extract_strided_slice %44 {offsets = [0, 0], sizes = [2, 256], strides = [1, 1]} : vector<2x512xf32> to vector<2x256xf32>
    %46 = arith.negf %45 : vector<2x256xf32>
    %47 = math.exp %46 : vector<2x256xf32>
    %cst_11 = arith.constant 1.000000e+00 : f32
    %48 = vector.broadcast %cst_11 : f32 to vector<2x256xf32>
    %49 = arith.addf %48, %47 : vector<2x256xf32>
    %50 = arith.divf %48, %49 : vector<2x256xf32>
    %51 = vector.extract_strided_slice %50 {offsets = [0, 0], sizes = [2, 128], strides = [1, 1]} : vector<2x256xf32> to vector<2x128xf32>
    %52 = vector.extract_strided_slice %50 {offsets = [0, 128], sizes = [2, 128], strides = [1, 1]} : vector<2x256xf32> to vector<2x128xf32>
    %53 = vector.extract_strided_slice %44 {offsets = [0, 256], sizes = [2, 128], strides = [1, 1]} : vector<2x512xf32> to vector<2x128xf32>
    %54 = vector.extract_strided_slice %44 {offsets = [0, 384], sizes = [2, 128], strides = [1, 1]} : vector<2x512xf32> to vector<2x128xf32>
    %55 = arith.mulf %51, %54 : vector<2x128xf32>
    %56 = arith.addf %53, %55 : vector<2x128xf32>
    %57 = math.tanh %56 : vector<2x128xf32>
    %cst_12 = arith.constant 1.000000e+00 : f32
    %58 = vector.broadcast %cst_12 : f32 to vector<2x128xf32>
    %59 = arith.subf %58, %52 : vector<2x128xf32>
    %60 = arith.mulf %59, %57 : vector<2x128xf32>
    %61 = arith.mulf %52, %41 : vector<2x128xf32>
    %62 = arith.addf %60, %61 : vector<2x128xf32>
    %63 = arith.truncf %62 : vector<2x128xf32> to vector<2x128xbf16>
    %cst_13 = arith.constant dense<0.000000e+00> : vector<2x512xf32>
    %64 = tpu.matmul %63, %0, %cst_13 {dimension_numbers = #tpu.dot_dimension_numbers<[1], [0], [0], [1], [0, 0, 1, 1], [], []>} : vector<2x128xbf16>, vector<128x512xbf16>, vector<2x512xf32> -> vector<2x512xf32>
    %65 = arith.addf %10, %64 : vector<2x512xf32>
    %66 = vector.extract_strided_slice %65 {offsets = [0, 0], sizes = [2, 256], strides = [1, 1]} : vector<2x512xf32> to vector<2x256xf32>
    %67 = arith.negf %66 : vector<2x256xf32>
    %68 = math.exp %67 : vector<2x256xf32>
    %cst_14 = arith.constant 1.000000e+00 : f32
    %69 = vector.broadcast %cst_14 : f32 to vector<2x256xf32>
    %70 = arith.addf %69, %68 : vector<2x256xf32>
    %71 = arith.divf %69, %70 : vector<2x256xf32>
    %72 = vector.extract_strided_slice %71 {offsets = [0, 0], sizes = [2, 128], strides = [1, 1]} : vector<2x256xf32> to vector<2x128xf32>
    %73 = vector.extract_strided_slice %71 {offsets = [0, 128], sizes = [2, 128], strides = [1, 1]} : vector<2x256xf32> to vector<2x128xf32>
    %74 = vector.extract_strided_slice %65 {offsets = [0, 256], sizes = [2, 128], strides = [1, 1]} : vector<2x512xf32> to vector<2x128xf32>
    %75 = vector.extract_strided_slice %65 {offsets = [0, 384], sizes = [2, 128], strides = [1, 1]} : vector<2x512xf32> to vector<2x128xf32>
    %76 = arith.mulf %72, %75 : vector<2x128xf32>
    %77 = arith.addf %74, %76 : vector<2x128xf32>
    %78 = math.tanh %77 : vector<2x128xf32>
    %cst_15 = arith.constant 1.000000e+00 : f32
    %79 = vector.broadcast %cst_15 : f32 to vector<2x128xf32>
    %80 = arith.subf %79, %73 : vector<2x128xf32>
    %81 = arith.mulf %80, %78 : vector<2x128xf32>
    %82 = arith.mulf %73, %62 : vector<2x128xf32>
    %83 = arith.addf %81, %82 : vector<2x128xf32>
    %84 = arith.truncf %83 : vector<2x128xf32> to vector<2x128xbf16>
    %cst_16 = arith.constant dense<0.000000e+00> : vector<2x512xf32>
    %85 = tpu.matmul %84, %0, %cst_16 {dimension_numbers = #tpu.dot_dimension_numbers<[1], [0], [0], [1], [0, 0, 1, 1], [], []>} : vector<2x128xbf16>, vector<128x512xbf16>, vector<2x512xf32> -> vector<2x512xf32>
    %86 = arith.addf %11, %85 : vector<2x512xf32>
    %87 = vector.extract_strided_slice %86 {offsets = [0, 0], sizes = [2, 256], strides = [1, 1]} : vector<2x512xf32> to vector<2x256xf32>
    %88 = arith.negf %87 : vector<2x256xf32>
    %89 = math.exp %88 : vector<2x256xf32>
    %cst_17 = arith.constant 1.000000e+00 : f32
    %90 = vector.broadcast %cst_17 : f32 to vector<2x256xf32>
    %91 = arith.addf %90, %89 : vector<2x256xf32>
    %92 = arith.divf %90, %91 : vector<2x256xf32>
    %93 = vector.extract_strided_slice %92 {offsets = [0, 0], sizes = [2, 128], strides = [1, 1]} : vector<2x256xf32> to vector<2x128xf32>
    %94 = vector.extract_strided_slice %92 {offsets = [0, 128], sizes = [2, 128], strides = [1, 1]} : vector<2x256xf32> to vector<2x128xf32>
    %95 = vector.extract_strided_slice %86 {offsets = [0, 256], sizes = [2, 128], strides = [1, 1]} : vector<2x512xf32> to vector<2x128xf32>
    %96 = vector.extract_strided_slice %86 {offsets = [0, 384], sizes = [2, 128], strides = [1, 1]} : vector<2x512xf32> to vector<2x128xf32>
    %97 = arith.mulf %93, %96 : vector<2x128xf32>
    %98 = arith.addf %95, %97 : vector<2x128xf32>
    %99 = math.tanh %98 : vector<2x128xf32>
    %cst_18 = arith.constant 1.000000e+00 : f32
    %100 = vector.broadcast %cst_18 : f32 to vector<2x128xf32>
    %101 = arith.subf %100, %94 : vector<2x128xf32>
    %102 = arith.mulf %101, %99 : vector<2x128xf32>
    %103 = arith.mulf %94, %83 : vector<2x128xf32>
    %104 = arith.addf %102, %103 : vector<2x128xf32>
    %105 = arith.truncf %104 : vector<2x128xf32> to vector<2x128xbf16>
    %cst_19 = arith.constant dense<0.000000e+00> : vector<2x512xf32>
    %106 = tpu.matmul %105, %0, %cst_19 {dimension_numbers = #tpu.dot_dimension_numbers<[1], [0], [0], [1], [0, 0, 1, 1], [], []>} : vector<2x128xbf16>, vector<128x512xbf16>, vector<2x512xf32> -> vector<2x512xf32>
    %107 = arith.addf %12, %106 : vector<2x512xf32>
    %108 = vector.extract_strided_slice %107 {offsets = [0, 0], sizes = [2, 256], strides = [1, 1]} : vector<2x512xf32> to vector<2x256xf32>
    %109 = arith.negf %108 : vector<2x256xf32>
    %110 = math.exp %109 : vector<2x256xf32>
    %cst_20 = arith.constant 1.000000e+00 : f32
    %111 = vector.broadcast %cst_20 : f32 to vector<2x256xf32>
    %112 = arith.addf %111, %110 : vector<2x256xf32>
    %113 = arith.divf %111, %112 : vector<2x256xf32>
    %114 = vector.extract_strided_slice %113 {offsets = [0, 0], sizes = [2, 128], strides = [1, 1]} : vector<2x256xf32> to vector<2x128xf32>
    %115 = vector.extract_strided_slice %113 {offsets = [0, 128], sizes = [2, 128], strides = [1, 1]} : vector<2x256xf32> to vector<2x128xf32>
    %116 = vector.extract_strided_slice %107 {offsets = [0, 256], sizes = [2, 128], strides = [1, 1]} : vector<2x512xf32> to vector<2x128xf32>
    %117 = vector.extract_strided_slice %107 {offsets = [0, 384], sizes = [2, 128], strides = [1, 1]} : vector<2x512xf32> to vector<2x128xf32>
    %118 = arith.mulf %114, %117 : vector<2x128xf32>
    %119 = arith.addf %116, %118 : vector<2x128xf32>
    %120 = math.tanh %119 : vector<2x128xf32>
    %cst_21 = arith.constant 1.000000e+00 : f32
    %121 = vector.broadcast %cst_21 : f32 to vector<2x128xf32>
    %122 = arith.subf %121, %115 : vector<2x128xf32>
    %123 = arith.mulf %122, %120 : vector<2x128xf32>
    %124 = arith.mulf %115, %104 : vector<2x128xf32>
    %125 = arith.addf %123, %124 : vector<2x128xf32>
    %126 = arith.truncf %125 : vector<2x128xf32> to vector<2x128xbf16>
    %cst_22 = arith.constant dense<0.000000e+00> : vector<2x512xf32>
    %127 = tpu.matmul %126, %0, %cst_22 {dimension_numbers = #tpu.dot_dimension_numbers<[1], [0], [0], [1], [0, 0, 1, 1], [], []>} : vector<2x128xbf16>, vector<128x512xbf16>, vector<2x512xf32> -> vector<2x512xf32>
    %128 = arith.addf %13, %127 : vector<2x512xf32>
    %129 = vector.extract_strided_slice %128 {offsets = [0, 0], sizes = [2, 256], strides = [1, 1]} : vector<2x512xf32> to vector<2x256xf32>
    %130 = arith.negf %129 : vector<2x256xf32>
    %131 = math.exp %130 : vector<2x256xf32>
    %cst_23 = arith.constant 1.000000e+00 : f32
    %132 = vector.broadcast %cst_23 : f32 to vector<2x256xf32>
    %133 = arith.addf %132, %131 : vector<2x256xf32>
    %134 = arith.divf %132, %133 : vector<2x256xf32>
    %135 = vector.extract_strided_slice %134 {offsets = [0, 0], sizes = [2, 128], strides = [1, 1]} : vector<2x256xf32> to vector<2x128xf32>
    %136 = vector.extract_strided_slice %134 {offsets = [0, 128], sizes = [2, 128], strides = [1, 1]} : vector<2x256xf32> to vector<2x128xf32>
    %137 = vector.extract_strided_slice %128 {offsets = [0, 256], sizes = [2, 128], strides = [1, 1]} : vector<2x512xf32> to vector<2x128xf32>
    %138 = vector.extract_strided_slice %128 {offsets = [0, 384], sizes = [2, 128], strides = [1, 1]} : vector<2x512xf32> to vector<2x128xf32>
    %139 = arith.mulf %135, %138 : vector<2x128xf32>
    %140 = arith.addf %137, %139 : vector<2x128xf32>
    %141 = math.tanh %140 : vector<2x128xf32>
    %cst_24 = arith.constant 1.000000e+00 : f32
    %142 = vector.broadcast %cst_24 : f32 to vector<2x128xf32>
    %143 = arith.subf %142, %136 : vector<2x128xf32>
    %144 = arith.mulf %143, %141 : vector<2x128xf32>
    %145 = arith.mulf %136, %125 : vector<2x128xf32>
    %146 = arith.addf %144, %145 : vector<2x128xf32>
    %147 = arith.truncf %146 : vector<2x128xf32> to vector<2x128xbf16>
    %cst_25 = arith.constant dense<0.000000e+00> : vector<2x512xf32>
    %148 = tpu.matmul %147, %0, %cst_25 {dimension_numbers = #tpu.dot_dimension_numbers<[1], [0], [0], [1], [0, 0, 1, 1], [], []>} : vector<2x128xbf16>, vector<128x512xbf16>, vector<2x512xf32> -> vector<2x512xf32>
    %149 = arith.addf %14, %148 : vector<2x512xf32>
    %150 = vector.extract_strided_slice %149 {offsets = [0, 0], sizes = [2, 256], strides = [1, 1]} : vector<2x512xf32> to vector<2x256xf32>
    %151 = arith.negf %150 : vector<2x256xf32>
    %152 = math.exp %151 : vector<2x256xf32>
    %cst_26 = arith.constant 1.000000e+00 : f32
    %153 = vector.broadcast %cst_26 : f32 to vector<2x256xf32>
    %154 = arith.addf %153, %152 : vector<2x256xf32>
    %155 = arith.divf %153, %154 : vector<2x256xf32>
    %156 = vector.extract_strided_slice %155 {offsets = [0, 0], sizes = [2, 128], strides = [1, 1]} : vector<2x256xf32> to vector<2x128xf32>
    %157 = vector.extract_strided_slice %155 {offsets = [0, 128], sizes = [2, 128], strides = [1, 1]} : vector<2x256xf32> to vector<2x128xf32>
    %158 = vector.extract_strided_slice %149 {offsets = [0, 256], sizes = [2, 128], strides = [1, 1]} : vector<2x512xf32> to vector<2x128xf32>
    %159 = vector.extract_strided_slice %149 {offsets = [0, 384], sizes = [2, 128], strides = [1, 1]} : vector<2x512xf32> to vector<2x128xf32>
    %160 = arith.mulf %156, %159 : vector<2x128xf32>
    %161 = arith.addf %158, %160 : vector<2x128xf32>
    %162 = math.tanh %161 : vector<2x128xf32>
    %cst_27 = arith.constant 1.000000e+00 : f32
    %163 = vector.broadcast %cst_27 : f32 to vector<2x128xf32>
    %164 = arith.subf %163, %157 : vector<2x128xf32>
    %165 = arith.mulf %164, %162 : vector<2x128xf32>
    %166 = arith.mulf %157, %146 : vector<2x128xf32>
    %167 = arith.addf %165, %166 : vector<2x128xf32>
    %168 = arith.truncf %167 : vector<2x128xf32> to vector<2x128xbf16>
    %cst_28 = arith.constant dense<0.000000e+00> : vector<2x512xf32>
    %169 = tpu.matmul %168, %0, %cst_28 {dimension_numbers = #tpu.dot_dimension_numbers<[1], [0], [0], [1], [0, 0, 1, 1], [], []>} : vector<2x128xbf16>, vector<128x512xbf16>, vector<2x512xf32> -> vector<2x512xf32>
    %170 = arith.addf %15, %169 : vector<2x512xf32>
    %171 = vector.extract_strided_slice %170 {offsets = [0, 0], sizes = [2, 256], strides = [1, 1]} : vector<2x512xf32> to vector<2x256xf32>
    %172 = arith.negf %171 : vector<2x256xf32>
    %173 = math.exp %172 : vector<2x256xf32>
    %cst_29 = arith.constant 1.000000e+00 : f32
    %174 = vector.broadcast %cst_29 : f32 to vector<2x256xf32>
    %175 = arith.addf %174, %173 : vector<2x256xf32>
    %176 = arith.divf %174, %175 : vector<2x256xf32>
    %177 = vector.extract_strided_slice %176 {offsets = [0, 0], sizes = [2, 128], strides = [1, 1]} : vector<2x256xf32> to vector<2x128xf32>
    %178 = vector.extract_strided_slice %176 {offsets = [0, 128], sizes = [2, 128], strides = [1, 1]} : vector<2x256xf32> to vector<2x128xf32>
    %179 = vector.extract_strided_slice %170 {offsets = [0, 256], sizes = [2, 128], strides = [1, 1]} : vector<2x512xf32> to vector<2x128xf32>
    %180 = vector.extract_strided_slice %170 {offsets = [0, 384], sizes = [2, 128], strides = [1, 1]} : vector<2x512xf32> to vector<2x128xf32>
    %181 = arith.mulf %177, %180 : vector<2x128xf32>
    %182 = arith.addf %179, %181 : vector<2x128xf32>
    %183 = math.tanh %182 : vector<2x128xf32>
    %cst_30 = arith.constant 1.000000e+00 : f32
    %184 = vector.broadcast %cst_30 : f32 to vector<2x128xf32>
    %185 = arith.subf %184, %178 : vector<2x128xf32>
    %186 = arith.mulf %185, %183 : vector<2x128xf32>
    %187 = arith.mulf %178, %167 : vector<2x128xf32>
    %188 = arith.addf %186, %187 : vector<2x128xf32>
    %189 = arith.truncf %188 : vector<2x128xf32> to vector<2x128xbf16>
    %cst_31 = arith.constant dense<0.000000e+00> : vector<2x512xf32>
    %190 = tpu.matmul %189, %0, %cst_31 {dimension_numbers = #tpu.dot_dimension_numbers<[1], [0], [0], [1], [0, 0, 1, 1], [], []>} : vector<2x128xbf16>, vector<128x512xbf16>, vector<2x512xf32> -> vector<2x512xf32>
    %191 = arith.addf %15, %190 : vector<2x512xf32>
    %192 = vector.extract_strided_slice %191 {offsets = [0, 0], sizes = [2, 256], strides = [1, 1]} : vector<2x512xf32> to vector<2x256xf32>
    %193 = arith.negf %192 : vector<2x256xf32>
    %194 = math.exp %193 : vector<2x256xf32>
    %cst_32 = arith.constant 1.000000e+00 : f32
    %195 = vector.broadcast %cst_32 : f32 to vector<2x256xf32>
    %196 = arith.addf %195, %194 : vector<2x256xf32>
    %197 = arith.divf %195, %196 : vector<2x256xf32>
    %198 = vector.extract_strided_slice %197 {offsets = [0, 0], sizes = [2, 128], strides = [1, 1]} : vector<2x256xf32> to vector<2x128xf32>
    %199 = vector.extract_strided_slice %197 {offsets = [0, 128], sizes = [2, 128], strides = [1, 1]} : vector<2x256xf32> to vector<2x128xf32>
    %200 = vector.extract_strided_slice %191 {offsets = [0, 256], sizes = [2, 128], strides = [1, 1]} : vector<2x512xf32> to vector<2x128xf32>
    %201 = vector.extract_strided_slice %191 {offsets = [0, 384], sizes = [2, 128], strides = [1, 1]} : vector<2x512xf32> to vector<2x128xf32>
    %202 = arith.mulf %198, %201 : vector<2x128xf32>
    %203 = arith.addf %200, %202 : vector<2x128xf32>
    %204 = math.tanh %203 : vector<2x128xf32>
    %cst_33 = arith.constant 1.000000e+00 : f32
    %205 = vector.broadcast %cst_33 : f32 to vector<2x128xf32>
    %206 = arith.subf %205, %199 : vector<2x128xf32>
    %207 = arith.mulf %206, %204 : vector<2x128xf32>
    %208 = arith.mulf %199, %188 : vector<2x128xf32>
    %209 = arith.addf %207, %208 : vector<2x128xf32>
    %210 = vector.extract_strided_slice %209 {offsets = [0, 64], sizes = [2, 64], strides = [1, 1]} : vector<2x128xf32> to vector<2x64xf32>
    %cst_34 = arith.constant dense<0.000000e+00> : vector<2xf32>
    %211 = vector.multi_reduction <add>, %210, %cst_34 [1] : vector<2x64xf32> to vector<2xf32>
    %212 = vector.shape_cast %211 : vector<2xf32> to vector<2x1xf32>
    %cst_35 = arith.constant 6.400000e+01 : f32
    %213 = vector.broadcast %cst_35 : f32 to vector<2x1xf32>
    %214 = arith.divf %212, %213 : vector<2x1xf32>
    %215 = vector.broadcast %214 : vector<2x1xf32> to vector<2x64xf32>
    %216 = arith.subf %210, %215 : vector<2x64xf32>
    %217 = arith.mulf %216, %216 : vector<2x64xf32>
    %cst_36 = arith.constant dense<0.000000e+00> : vector<2xf32>
    %218 = vector.multi_reduction <add>, %217, %cst_36 [1] : vector<2x64xf32> to vector<2xf32>
    %219 = vector.shape_cast %218 : vector<2xf32> to vector<2x1xf32>
    %cst_37 = arith.constant 6.400000e+01 : f32
    %220 = vector.broadcast %cst_37 : f32 to vector<2x1xf32>
    %221 = arith.divf %219, %220 : vector<2x1xf32>
    %222 = vector.broadcast %214 : vector<2x1xf32> to vector<2x64xf32>
    %223 = arith.subf %210, %222 : vector<2x64xf32>
    %cst_38 = arith.constant 9.99999974E-6 : f32
    %224 = vector.broadcast %cst_38 : f32 to vector<2x1xf32>
    %225 = arith.addf %221, %224 : vector<2x1xf32>
    %226 = math.rsqrt %225 : vector<2x1xf32>
    %227 = vector.broadcast %226 : vector<2x1xf32> to vector<2x64xf32>
    %228 = arith.mulf %223, %227 : vector<2x64xf32>
    %c0_39 = arith.constant 0 : index
    %c0_40 = arith.constant 0 : index
    %229 = vector.load %arg4[%c0_39, %c0_40] : memref<2x64xf32, #tpu.memory_space<vmem>>, vector<1x64xf32>
    %230 = vector.broadcast %229 : vector<1x64xf32> to vector<2x64xf32>
    %231 = arith.mulf %228, %230 : vector<2x64xf32>
    %c1 = arith.constant 1 : index
    %c0_41 = arith.constant 0 : index
    %232 = vector.load %arg4[%c1, %c0_41] : memref<2x64xf32, #tpu.memory_space<vmem>>, vector<1x64xf32>
    %233 = vector.broadcast %232 : vector<1x64xf32> to vector<2x64xf32>
    %234 = arith.addf %231, %233 : vector<2x64xf32>
    %c0_42 = arith.constant 0 : index
    %c0_43 = arith.constant 0 : index
    %235 = vector.load %arg5[%c0_42, %c0_43] : memref<64x128xf32, #tpu.memory_space<vmem>>, vector<64x128xf32>
    %cst_44 = arith.constant dense<0.000000e+00> : vector<2x128xf32>
    %236 = tpu.matmul %234, %235, %cst_44 {dimension_numbers = #tpu.dot_dimension_numbers<[1], [0], [0], [1], [0, 0, 1, 1], [], []>} : vector<2x64xf32>, vector<64x128xf32>, vector<2x128xf32> -> vector<2x128xf32>
    %c0_45 = arith.constant 0 : index
    %c0_46 = arith.constant 0 : index
    %237 = vector.load %arg6[%c0_45, %c0_46] : memref<1x128xf32, #tpu.memory_space<vmem>>, vector<1x128xf32>
    %238 = vector.broadcast %237 : vector<1x128xf32> to vector<2x128xf32>
    %239 = arith.addf %236, %238 : vector<2x128xf32>
    %c0_47 = arith.constant 0 : index
    %c0_48 = arith.constant 0 : index
    %240 = vector.load %arg7[%c0_47, %c0_48] : memref<2x128xf32, #tpu.memory_space<vmem>>, vector<2x128xf32>
    tpu.vector_store %arg7[%c0_47, %c0_48], %239 {strides = array<i32>} : memref<2x128xf32, #tpu.memory_space<vmem>>, vector<2x128xf32>,
    return
  }
}

</mosaic_0001>

<llo_original>
// kernel: tpu_custom_call.1
$region0: #{tpu_custom_call.1}
  #allocation0 [shape = 'u32[]', space=smem, size = 0x4, offset = 0x4, fixed_abs, tag = 'smem constant byte address 0x4 - core index']
  #allocation1 [shape = 'u32[72,128]{1,0:T(1,128)}', space=vmem, size = 0x9000, scoped, tag = 'internal scratch']
  %s0 = inlined_call_operand.vmem [shape: f32[16,8], index: 0, kind: input, shape index: {}]
  %s1 = inlined_call_operand.vmem [shape: bf16[8,512], index: 1, kind: input, shape index: {}]
  %s2 = inlined_call_operand.hbm [shape: bf16[128,512], index: 2, kind: input, shape index: {}]
  %s3 = inlined_call_operand.vmem [shape: f32[1,512], index: 3, kind: input, shape index: {}]
  %s4 = inlined_call_operand.vmem [shape: f32[2,64], index: 4, kind: input, shape index: {}]
  %s5 = inlined_call_operand.hbm [shape: f32[64,128], index: 5, kind: input, shape index: {}]
  %s6 = inlined_call_operand.vmem [shape: f32[1,128], index: 6, kind: input, shape index: {}]
  %s7 = inlined_call_operand.hbm [shape: f32[2,128], index: 7, kind: output, shape index: {}]
  %s8 = sld [smem:[#allocation0]]
  $region46: #{tpu_custom_call.1} parent=0
    _
  %s10 = ssub.s32 1, %s8
  %s11 = scalar_select 0, %s10, %s8
  $region1: #{tpu_custom_call.1} parent=0
    #allocation2 [shape = 'u8[131072]{0}', space=vmem, size = 0x20000, scoped, tag = 'input window, operand 2, single buffered']
    #allocation3 [shape = 's32[1]{0}', space=sflag, size = 0x4, scoped, tag = 'scoped memory for tpu_custom_call.1']
    #allocation4 [shape = 's32[1]{0}', space=sflag, size = 0x4, scoped, tag = 'scoped memory for tpu_custom_call.1']
    #allocation5 [shape = 'u8[32768]{0}', space=vmem, size = 0x8000, scoped, tag = 'input window, operand 5, single buffered']
    #allocation6 [shape = 's32[1]{0}', space=sflag, size = 0x4, scoped, tag = 'scoped memory for tpu_custom_call.1']
    #allocation7 [shape = 'u8[1024]{0}', space=vmem, size = 0x400, scoped, tag = 'output window, operand 0, single buffered']
    %12 = vsyncpa [#allocation3], 0
    %13 = vsyncpa [#allocation6], 0
    %14 = vsyncpa [#allocation4], 0
    // Predicated region
    $region2: #{tpu_custom_call.1} parent=1 // pred_check
      _
    $region3: #{tpu_custom_call.1} parent=1 // pred_check_branch
      %16 = sbr.rel (0) target = $region5
    $region4: #{tpu_custom_call.1} parent=1 // pred_region
      _
    $region5: #{tpu_custom_call.1} parent=1 // pred_fallthru
      _
    // Predicated region
    $region6: #{tpu_custom_call.1} parent=1 // pred_check
      _
    $region7: #{tpu_custom_call.1} parent=1 // pred_check_branch
      %18 = sbr.rel (0) target = $region9
    $region8: #{tpu_custom_call.1} parent=1 // pred_region
      _
    $region9: #{tpu_custom_call.1} parent=1 // pred_fallthru
      _
    // Predicated region
    $region10: #{tpu_custom_call.1} parent=1 // pred_check
      _
    $region11: #{tpu_custom_call.1} parent=1 // pred_check_branch
      %20 = sbr.rel (0) target = $region13
    $region12: #{tpu_custom_call.1} parent=1 // pred_region
      %22 = vsyncadd [#allocation3], 0
      %s23 = sshll.u32 %s2, 4
      %s24 = int_to_ptr.hbm [resolvable:$true] %s23
      %s25 = sshll.u32 [#allocation2], 4
      %s26 = int_to_ptr.vmem [resolvable:$true] %s25
      %31 = dma.hbm_to_vmem [thread:$0]  %s24, 4096, %s26, [#allocation3], 256, 256, 16
    $region13: #{tpu_custom_call.1} parent=1 // pred_fallthru
      _
    // Predicated region
    $region14: #{tpu_custom_call.1} parent=1 // pred_check
      _
    $region15: #{tpu_custom_call.1} parent=1 // pred_check_branch
      %33 = sbr.rel (0) target = $region17
    $region16: #{tpu_custom_call.1} parent=1 // pred_region
      _
    $region17: #{tpu_custom_call.1} parent=1 // pred_fallthru
      _
    // Predicated region
    $region18: #{tpu_custom_call.1} parent=1 // pred_check
      _
    $region19: #{tpu_custom_call.1} parent=1 // pred_check_branch
      %35 = sbr.rel (0) target = $region21
    $region20: #{tpu_custom_call.1} parent=1 // pred_region
      _
    $region21: #{tpu_custom_call.1} parent=1 // pred_fallthru
      _
    // Predicated region
    $region22: #{tpu_custom_call.1} parent=1 // pred_check
      _
    $region23: #{tpu_custom_call.1} parent=1 // pred_check_branch
      %37 = sbr.rel (0) target = $region25
    $region24: #{tpu_custom_call.1} parent=1 // pred_region
      %39 = vsyncadd [#allocation6], 0
      %s40 = sshll.u32 %s5, 4
      %s41 = int_to_ptr.hbm [resolvable:$true] %s40
      %s42 = sshll.u32 [#allocation5], 4
      %s43 = int_to_ptr.vmem [resolvable:$true] %s42
      %48 = dma.hbm_to_vmem [thread:$0]  %s41, 1024, %s43, [#allocation6], 128, 128, 8
    $region25: #{tpu_custom_call.1} parent=1 // pred_fallthru
      _
    // Predicated region
    $region26: #{tpu_custom_call.1} parent=1 // pred_check
      _
    $region27: #{tpu_custom_call.1} parent=1 // pred_check_branch
      %50 = sbr.rel (0) target = $region29
    $region28: #{tpu_custom_call.1} parent=1 // pred_region
      _
    $region29: #{tpu_custom_call.1} parent=1 // pred_fallthru
      _
    // Predicated region
    $region30: #{tpu_custom_call.1} parent=1 // pred_check
      _
    $region31: #{tpu_custom_call.1} parent=1 // pred_check_branch
      %52 = sbr.rel (0) target = $region33
    $region32: #{tpu_custom_call.1} parent=1 // pred_region
      %54 = dma.done [#allocation3], 4096
    $region33: #{tpu_custom_call.1} parent=1 // pred_fallthru
      _
    // Predicated region
    $region34: #{tpu_custom_call.1} parent=1 // pred_check
      _
    $region35: #{tpu_custom_call.1} parent=1 // pred_check_branch
      %56 = sbr.rel (0) target = $region37
    $region36: #{tpu_custom_call.1} parent=1 // pred_region
      %58 = dma.done [#allocation6], 1024
    $region37: #{tpu_custom_call.1} parent=1 // pred_fallthru
      _
    %v60 = vld [vmem:[#allocation2] sm:$0xff]
    %v61 = vld [vmem:[#allocation2 + $0x8] sm:$0xff]
    %v62 = vld [vmem:[#allocation2 + $0x10] sm:$0xff]
    %v63 = vld [vmem:[#allocation2 + $0x18] sm:$0xff]
    %v64 = vld [vmem:[#allocation2 + $0x20] sm:$0xff]
    %v65 = vld [vmem:[#allocation2 + $0x28] sm:$0xff]
    %v66 = vld [vmem:[#allocation2 + $0x30] sm:$0xff]
    %v67 = vld [vmem:[#allocation2 + $0x38] sm:$0xff]
    %v68 = vld [vmem:[#allocation2 + $0x40] sm:$0xff]
    %v69 = vld [vmem:[#allocation2 + $0x48] sm:$0xff]
    %v70 = vld [vmem:[#allocation2 + $0x50] sm:$0xff]
    %v71 = vld [vmem:[#allocation2 + $0x58] sm:$0xff]
    %v72 = vld [vmem:[#allocation2 + $0x60] sm:$0xff]
    %v73 = vld [vmem:[#allocation2 + $0x68] sm:$0xff]
    %v74 = vld [vmem:[#allocation2 + $0x70] sm:$0xff]
    %v75 = vld [vmem:[#allocation2 + $0x78] sm:$0xff]
    %v76 = vld [vmem:[#allocation2 + $0x80] sm:$0xff]
    %v77 = vld [vmem:[#allocation2 + $0x88] sm:$0xff]
    %v78 = vld [vmem:[#allocation2 + $0x90] sm:$0xff]
    %v79 = vld [vmem:[#allocation2 + $0x98] sm:$0xff]
    %v80 = vld [vmem:[#allocation2 + $0xa0] sm:$0xff]
    %v81 = vld [vmem:[#allocation2 + $0xa8] sm:$0xff]
    %v82 = vld [vmem:[#allocation2 + $0xb0] sm:$0xff]
    %v83 = vld [vmem:[#allocation2 + $0xb8] sm:$0xff]
    %v84 = vld [vmem:[#allocation2 + $0xc0] sm:$0xff]
    %v85 = vld [vmem:[#allocation2 + $0xc8] sm:$0xff]
    %v86 = vld [vmem:[#allocation2 + $0xd0] sm:$0xff]
    %v87 = vld [vmem:[#allocation2 + $0xd8] sm:$0xff]
    %v88 = vld [vmem:[#allocation2 + $0xe0] sm:$0xff]
    %v89 = vld [vmem:[#allocation2 + $0xe8] sm:$0xff]
    %v90 = vld [vmem:[#allocation2 + $0xf0] sm:$0xff]
    %v91 = vld [vmem:[#allocation2 + $0xf8] sm:$0xff]
    %v92 = vld [vmem:[%s0] sm:$0xff]
    %v93 = vld [vmem:[%s0 + $0x8] sm:$0xff]
    %v94 = vpack.c.bf16 %v93, %v92
    %v95 = vld [vmem:[%s1] sm:$0xff]
    %v96 = vld [vmem:[%s1 + $0x8] sm:$0xff]
    %v97 = vld [vmem:[%s3] sm:$0xf]
    %v99 = vperm.slane %v97, 0
    %v100 = vperm.slane %v97, 1
    %v101 = vperm.slane %v97, 2
    %v102 = vperm.slane %v97, 3
    %v109 = vunpack.c.l.b16 %v95
    %v110 = vunpack.c.h.b16 %v95
    %v111 = vunpack.c.l.b16 %v96
    %v112 = vunpack.c.h.b16 %v96
    %v113 = vpack.c.b16 %v109, %v109
    %v114 = vpack.c.b16 %v110, %v110
    %v115 = vpack.c.b16 %v111, %v111
    %v116 = vpack.c.b16 %v112, %v112
    %vm117 = vcmask 64512
    %v119 = vsel %vm117, %v94, 0
    %vm121 = vcmask 1043456
    %v123 = vsel %vm121, %v113, 0
    %v126 = vsel %vm121, %v114, 0
    %v129 = vsel %vm121, %v115, 0
    %v132 = vsel %vm121, %v116, 0
    %134 = vmatpush.bf16.msra.mxu0 0
    %135 = vmatpush.bf16.msra.mxu0 0
    %136 = vmatpush.bf16.msra.mxu0 0
    %137 = vmatpush.bf16.msra.mxu0 0
    %138 = vmatpush.bf16.msra.mxu0 0
    %139 = vmatpush.bf16.msra.mxu0 0
    %140 = vmatpush.bf16.msra.mxu0 0
    %141 = vmatpush.bf16.msra.mxu0 %v123
    %142 = vmatmul.bf16.gmra.mxu0 %v119
    %v143 = vpop.f32.mrf.mxu0
    %v144 = vadd.f32 %v99, %v143
    %v145 = vpop.f32.mrf.mxu0
    %v146 = vadd.f32 %v99, %v145
    %147 = vdwg.mxu0
    %148 = vmatpush.bf16.msra.mxu0 0
    %149 = vmatpush.bf16.msra.mxu0 0
    %150 = vmatpush.bf16.msra.mxu0 0
    %151 = vmatpush.bf16.msra.mxu0 0
    %152 = vmatpush.bf16.msra.mxu0 0
    %153 = vmatpush.bf16.msra.mxu0 0
    %154 = vmatpush.bf16.msra.mxu0 0
    %155 = vmatpush.bf16.msra.mxu0 %v126
    %156 = vmatmul.bf16.gmra.mxu0 %v119
    %v157 = vpop.f32.mrf.mxu0
    %v158 = vadd.f32 %v100, %v157
    %v159 = vpop.f32.mrf.mxu0
    %v160 = vadd.f32 %v100, %v159
    %161 = vdwg.mxu0
    %162 = vmatpush.bf16.msra.mxu0 0
    %163 = vmatpush.bf16.msra.mxu0 0
    %164 = vmatpush.bf16.msra.mxu0 0
    %165 = vmatpush.bf16.msra.mxu0 0
    %166 = vmatpush.bf16.msra.mxu0 0
    %167 = vmatpush.bf16.msra.mxu0 0
    %168 = vmatpush.bf16.msra.mxu0 0
    %169 = vmatpush.bf16.msra.mxu0 %v129
    %170 = vmatmul.bf16.gmra.mxu0 %v119
    %v171 = vpop.f32.mrf.mxu0
    %v172 = vadd.f32 %v101, %v171
    %v173 = vpop.f32.mrf.mxu0
    %v174 = vadd.f32 %v101, %v173
    %175 = vdwg.mxu0
    %176 = vmatpush.bf16.msra.mxu0 0
    %177 = vmatpush.bf16.msra.mxu0 0
    %178 = vmatpush.bf16.msra.mxu0 0
    %179 = vmatpush.bf16.msra.mxu0 0
    %180 = vmatpush.bf16.msra.mxu0 0
    %181 = vmatpush.bf16.msra.mxu0 0
    %182 = vmatpush.bf16.msra.mxu0 0
    %183 = vmatpush.bf16.msra.mxu0 %v132
    %184 = vmatmul.bf16.gmra.mxu0 %v119
    %v185 = vpop.f32.mrf.mxu0
    %v186 = vadd.f32 %v102, %v185
    %v187 = vpop.f32.mrf.mxu0
    %v188 = vadd.f32 %v102, %v187
    %189 = vdwg.mxu0
    %v190 = vlaneseq
    %v191 = vand.u32 %v190, 127
    %vm192 = vcmp.lt.s32.totalorder %v191, 64
    %v193 = vsel %vm192, 1, 0
    %v194 = vcvt.s32.f32 %v193
    %v195 = vxor.u32 %v144, 2147483648
    %v196 = vxor.u32 %v158, 2147483648
    %v197 = vmul.f32 %v195, 1.442695
    %v198 = vpow.pop %v197
    %v199 = vmul.f32 %v196, 1.442695
    %v200 = vpow.pop %v199
    %v201 = vadd.f32 %v198, 1.0
    %v202 = vadd.f32 %v200, 1.0
    %v203 = vrcp.pop %v201
    %v204 = vmul.f32 %v201, %v203
    %v205 = vsub.f32 1.0, %v204
    %v206 = vmul.f32 %v203, %v205
    %v207 = vadd.f32 %v203, %v206
    %vm208 = vweird.f32 %v201
    %vm209 = vweird.f32 %v203
    %vm210 = vmor %vm208, %vm209
    %v211 = vsel %vm210, %v203, %v207
    %v212 = vand.u32 2147483647, %v201
    %vm213 = vcmp.eq.f32.partialorder %v212, 8.507059e+37
    %v214 = vand.u32 %v201, 2147483648
    %v215 = vor.u32 1.1754944e-38, %v214
    %v216 = vsel %vm213, %v215, %v211
    %v217 = vmul.f32 1.0, %v216
    %v218 = vrcp.pop %v202
    %v219 = vmul.f32 %v202, %v218
    %v220 = vsub.f32 1.0, %v219
    %v221 = vmul.f32 %v218, %v220
    %v222 = vadd.f32 %v218, %v221
    %vm223 = vweird.f32 %v202
    %vm224 = vweird.f32 %v218
    %vm225 = vmor %vm223, %vm224
    %v226 = vsel %vm225, %v218, %v222
    %v227 = vand.u32 2147483647, %v202
    %vm228 = vcmp.eq.f32.partialorder %v227, 8.507059e+37
    %v229 = vand.u32 %v202, 2147483648
    %v230 = vor.u32 1.1754944e-38, %v229
    %v231 = vsel %vm228, %v230, %v226
    %v232 = vmul.f32 1.0, %v231
    %v233 = vmul.f32 %v217, %v186
    %v234 = vadd.f32 %v172, %v233
    %v235 = vtanh.pop %v234
    %v236 = vsub.f32 1.0, %v232
    %v237 = vmul.f32 %v236, %v235
    %v238 = vmul.f32 %v232, 0.0
    %v239 = vadd.f32 %v237, %v238
    %v240 = vmul.f32 %v239, %v194
    %v241 = vpack.c.bf16 %v240, %v240
    %v274 = vunpack.c.l.b16 %v60
    %v275 = vunpack.c.h.b16 %v60
    %v276 = vunpack.c.l.b16 %v61
    %v277 = vunpack.c.h.b16 %v61
    %v278 = vunpack.c.l.b16 %v62
    %v279 = vunpack.c.h.b16 %v62
    %v280 = vunpack.c.l.b16 %v63
    %v281 = vunpack.c.h.b16 %v63
    %v282 = vunpack.c.l.b16 %v64
    %v283 = vunpack.c.h.b16 %v64
    %v284 = vunpack.c.l.b16 %v65
    %v285 = vunpack.c.h.b16 %v65
    %v286 = vunpack.c.l.b16 %v66
    %v287 = vunpack.c.h.b16 %v66
    %v288 = vunpack.c.l.b16 %v67
    %v289 = vunpack.c.h.b16 %v67
    %v290 = vunpack.c.l.b16 %v68
    %v291 = vunpack.c.h.b16 %v68
    %v292 = vunpack.c.l.b16 %v69
    %v293 = vunpack.c.h.b16 %v69
    %v294 = vunpack.c.l.b16 %v70
    %v295 = vunpack.c.h.b16 %v70
    %v296 = vunpack.c.l.b16 %v71
    %v297 = vunpack.c.h.b16 %v71
    %v298 = vunpack.c.l.b16 %v72
    %v299 = vunpack.c.h.b16 %v72
    %v300 = vunpack.c.l.b16 %v73
    %v301 = vunpack.c.h.b16 %v73
    %v302 = vunpack.c.l.b16 %v74
    %v303 = vunpack.c.h.b16 %v74
    %v304 = vunpack.c.l.b16 %v75
    %v305 = vunpack.c.h.b16 %v75
    %v306 = vunpack.c.l.b16 %v76
    %v307 = vunpack.c.h.b16 %v76
    %v308 = vunpack.c.l.b16 %v77
    %v309 = vunpack.c.h.b16 %v77
    %v310 = vunpack.c.l.b16 %v78
    %v311 = vunpack.c.h.b16 %v78
    %v312 = vunpack.c.l.b16 %v79
    %v313 = vunpack.c.h.b16 %v79
    %v314 = vunpack.c.l.b16 %v80
    %v315 = vunpack.c.h.b16 %v80
    %v316 = vunpack.c.l.b16 %v81
    %v317 = vunpack.c.h.b16 %v81
    %v318 = vunpack.c.l.b16 %v82
    %v319 = vunpack.c.h.b16 %v82
    %v320 = vunpack.c.l.b16 %v83
    %v321 = vunpack.c.h.b16 %v83
    %v322 = vunpack.c.l.b16 %v84
    %v323 = vunpack.c.h.b16 %v84
    %v324 = vunpack.c.l.b16 %v85
    %v325 = vunpack.c.h.b16 %v85
    %v326 = vunpack.c.l.b16 %v86
    %v327 = vunpack.c.h.b16 %v86
    %v328 = vunpack.c.l.b16 %v87
    %v329 = vunpack.c.h.b16 %v87
    %v330 = vunpack.c.l.b16 %v88
    %v331 = vunpack.c.h.b16 %v88
    %v332 = vunpack.c.l.b16 %v89
    %v333 = vunpack.c.h.b16 %v89
    %v334 = vunpack.c.l.b16 %v90
    %v335 = vunpack.c.h.b16 %v90
    %v336 = vunpack.c.l.b16 %v91
    %v337 = vunpack.c.h.b16 %v91
    %v338 = vpack.c.b16 %v278, %v274
    %v339 = vpack.c.b16 %v279, %v275
    %v340 = vpack.c.b16 %v280, %v276
    %v341 = vpack.c.b16 %v281, %v277
    %v342 = vpack.c.b16 %v286, %v282
    %v343 = vpack.c.b16 %v287, %v283
    %v344 = vpack.c.b16 %v288, %v284
    %v345 = vpack.c.b16 %v289, %v285
    %v346 = vpack.c.b16 %v294, %v290
    %v347 = vpack.c.b16 %v295, %v291
    %v348 = vpack.c.b16 %v296, %v292
    %v349 = vpack.c.b16 %v297, %v293
    %v350 = vpack.c.b16 %v302, %v298
    %v351 = vpack.c.b16 %v303, %v299
    %v352 = vpack.c.b16 %v304, %v300
    %v353 = vpack.c.b16 %v305, %v301
    %v354 = vpack.c.b16 %v310, %v306
    %v355 = vpack.c.b16 %v311, %v307
    %v356 = vpack.c.b16 %v312, %v308
    %v357 = vpack.c.b16 %v313, %v309
    %v358 = vpack.c.b16 %v318, %v314
    %v359 = vpack.c.b16 %v319, %v315
    %v360 = vpack.c.b16 %v320, %v316
    %v361 = vpack.c.b16 %v321, %v317
    %v362 = vpack.c.b16 %v326, %v322
    %v363 = vpack.c.b16 %v327, %v323
    %v364 = vpack.c.b16 %v328, %v324
    %v365 = vpack.c.b16 %v329, %v325
    %v366 = vpack.c.b16 %v334, %v330
    %v367 = vpack.c.b16 %v335, %v331
    %v368 = vpack.c.b16 %v336, %v332
    %v369 = vpack.c.b16 %v337, %v333
    %402 = vmatpush.bf16.msra.mxu0 %v366
    %403 = vmatpush.bf16.msra.mxu0 %v362
    %404 = vmatpush.bf16.msra.mxu0 %v358
    %405 = vmatpush.bf16.msra.mxu0 %v354
    %406 = vmatpush.bf16.msra.mxu0 %v350
    %407 = vmatpush.bf16.msra.mxu0 %v346
    %408 = vmatpush.bf16.msra.mxu0 %v342
    %409 = vmatpush.bf16.msra.mxu0 %v338
    %410 = vmatmul.bf16.gmra.mxu0 %v241
    %v411 = vpop.f32.mrf.mxu0
    %v412 = vadd.f32 0.0, %v411
    %v413 = vpop.f32.mrf.mxu0
    %414 = vdwg.mxu0
    %415 = vmatpush.bf16.msra.mxu0 %v367
    %416 = vmatpush.bf16.msra.mxu0 %v363
    %417 = vmatpush.bf16.msra.mxu0 %v359
    %418 = vmatpush.bf16.msra.mxu0 %v355
    %419 = vmatpush.bf16.msra.mxu0 %v351
    %420 = vmatpush.bf16.msra.mxu0 %v347
    %421 = vmatpush.bf16.msra.mxu0 %v343
    %422 = vmatpush.bf16.msra.mxu0 %v339
    %423 = vmatmul.bf16.gmra.mxu0 %v241
    %v424 = vpop.f32.mrf.mxu0
    %v425 = vadd.f32 0.0, %v424
    %v426 = vpop.f32.mrf.mxu0
    %427 = vdwg.mxu0
    %428 = vmatpush.bf16.msra.mxu0 %v368
    %429 = vmatpush.bf16.msra.mxu0 %v364
    %430 = vmatpush.bf16.msra.mxu0 %v360
    %431 = vmatpush.bf16.msra.mxu0 %v356
    %432 = vmatpush.bf16.msra.mxu0 %v352
    %433 = vmatpush.bf16.msra.mxu0 %v348
    %434 = vmatpush.bf16.msra.mxu0 %v344
    %435 = vmatpush.bf16.msra.mxu0 %v340
    %436 = vmatmul.bf16.gmra.mxu0 %v241
    %v437 = vpop.f32.mrf.mxu0
    %v438 = vadd.f32 0.0, %v437
    %v439 = vpop.f32.mrf.mxu0
    %440 = vdwg.mxu0
    %441 = vmatpush.bf16.msra.mxu0 %v369
    %442 = vmatpush.bf16.msra.mxu0 %v365
    %443 = vmatpush.bf16.msra.mxu0 %v361
    %444 = vmatpush.bf16.msra.mxu0 %v357
    %445 = vmatpush.bf16.msra.mxu0 %v353
    %446 = vmatpush.bf16.msra.mxu0 %v349
    %447 = vmatpush.bf16.msra.mxu0 %v345
    %448 = vmatpush.bf16.msra.mxu0 %v341
    %449 = vmatmul.bf16.gmra.mxu0 %v241
    %v450 = vpop.f32.mrf.mxu0
    %v451 = vadd.f32 0.0, %v450
    %v452 = vpop.f32.mrf.mxu0
    %453 = vdwg.mxu0
    %v458 = vrot.slane %v412, 6
    %v459 = vrot.slane %v425, 6
    %v460 = vrot.slane %v438, 6
    %v461 = vrot.slane %v451, 6
    %v466 = vadd.f32 %v144, %v458
    %v467 = vadd.f32 %v158, %v459
    %v468 = vadd.f32 %v172, %v460
    %v469 = vadd.f32 %v186, %v461
    %v470 = vxor.u32 %v466, 2147483648
    %v471 = vxor.u32 %v467, 2147483648
    %v472 = vmul.f32 %v470, 1.442695
    %v473 = vpow.pop %v472
    %v474 = vmul.f32 %v471, 1.442695
    %v475 = vpow.pop %v474
    %v476 = vadd.f32 %v473, 1.0
    %v477 = vadd.f32 %v475, 1.0
    %v478 = vrcp.pop %v476
    %v479 = vmul.f32 %v476, %v478
    %v480 = vsub.f32 1.0, %v479
    %v481 = vmul.f32 %v478, %v480
    %v482 = vadd.f32 %v478, %v481
    %vm483 = vweird.f32 %v476
    %vm484 = vweird.f32 %v478
    %vm485 = vmor %vm483, %vm484
    %v486 = vsel %vm485, %v478, %v482
    %v487 = vand.u32 2147483647, %v476
    %vm488 = vcmp.eq.f32.partialorder %v487, 8.507059e+37
    %v489 = vand.u32 %v476, 2147483648
    %v490 = vor.u32 1.1754944e-38, %v489
    %v491 = vsel %vm488, %v490, %v486
    %v492 = vmul.f32 1.0, %v491
    %v493 = vrcp.pop %v477
    %v494 = vmul.f32 %v477, %v493
    %v495 = vsub.f32 1.0, %v494
    %v496 = vmul.f32 %v493, %v495
    %v497 = vadd.f32 %v493, %v496
    %vm498 = vweird.f32 %v477
    %vm499 = vweird.f32 %v493
    %vm500 = vmor %vm498, %vm499
    %v501 = vsel %vm500, %v493, %v497
    %v502 = vand.u32 2147483647, %v477
    %vm503 = vcmp.eq.f32.partialorder %v502, 8.507059e+37
    %v504 = vand.u32 %v477, 2147483648
    %v505 = vor.u32 1.1754944e-38, %v504
    %v506 = vsel %vm503, %v505, %v501
    %v507 = vmul.f32 1.0, %v506
    %v508 = vmul.f32 %v492, %v469
    %v509 = vadd.f32 %v468, %v508
    %v510 = vtanh.pop %v509
    %v511 = vsub.f32 1.0, %v507
    %v512 = vmul.f32 %v511, %v510
    %v514 = vrot.slane %v240, 6
    %v516 = vmul.f32 %v507, %v514
    %v517 = vadd.f32 %v512, %v516
    %v518 = vpack.c.bf16 %v517, %v517
    %v520 = vrot.slane %v518, 1
    %522 = vmatpush.bf16.msra.mxu0 %v366
    %523 = vmatpush.bf16.msra.mxu0 %v362
    %524 = vmatpush.bf16.msra.mxu0 %v358
    %525 = vmatpush.bf16.msra.mxu0 %v354
    %526 = vmatpush.bf16.msra.mxu0 %v350
    %527 = vmatpush.bf16.msra.mxu0 %v346
    %528 = vmatpush.bf16.msra.mxu0 %v342
    %529 = vmatpush.bf16.msra.mxu0 %v338
    %530 = vmatmul.bf16.gmra.mxu0 %v520
    %v531 = vpop.f32.mrf.mxu0
    %v532 = vadd.f32 0.0, %v531
    %v533 = vpop.f32.mrf.mxu0
    %534 = vdwg.mxu0
    %535 = vmatpush.bf16.msra.mxu0 %v367
    %536 = vmatpush.bf16.msra.mxu0 %v363
    %537 = vmatpush.bf16.msra.mxu0 %v359
    %538 = vmatpush.bf16.msra.mxu0 %v355
    %539 = vmatpush.bf16.msra.mxu0 %v351
    %540 = vmatpush.bf16.msra.mxu0 %v347
    %541 = vmatpush.bf16.msra.mxu0 %v343
    %542 = vmatpush.bf16.msra.mxu0 %v339
    %543 = vmatmul.bf16.gmra.mxu0 %v520
    %v544 = vpop.f32.mrf.mxu0
    %v545 = vadd.f32 0.0, %v544
    %v546 = vpop.f32.mrf.mxu0
    %547 = vdwg.mxu0
    %548 = vmatpush.bf16.msra.mxu0 %v368
    %549 = vmatpush.bf16.msra.mxu0 %v364
    %550 = vmatpush.bf16.msra.mxu0 %v360
    %551 = vmatpush.bf16.msra.mxu0 %v356
    %552 = vmatpush.bf16.msra.mxu0 %v352
    %553 = vmatpush.bf16.msra.mxu0 %v348
    %554 = vmatpush.bf16.msra.mxu0 %v344
    %555 = vmatpush.bf16.msra.mxu0 %v340
    %556 = vmatmul.bf16.gmra.mxu0 %v520
    %v557 = vpop.f32.mrf.mxu0
    %v558 = vadd.f32 0.0, %v557
    %v559 = vpop.f32.mrf.mxu0
    %560 = vdwg.mxu0
    %561 = vmatpush.bf16.msra.mxu0 %v369
    %562 = vmatpush.bf16.msra.mxu0 %v365
    %563 = vmatpush.bf16.msra.mxu0 %v361
    %564 = vmatpush.bf16.msra.mxu0 %v357
    %565 = vmatpush.bf16.msra.mxu0 %v353
    %566 = vmatpush.bf16.msra.mxu0 %v349
    %567 = vmatpush.bf16.msra.mxu0 %v345
    %568 = vmatpush.bf16.msra.mxu0 %v341
    %569 = vmatmul.bf16.gmra.mxu0 %v520
    %v570 = vpop.f32.mrf.mxu0
    %v571 = vadd.f32 0.0, %v570
    %v572 = vpop.f32.mrf.mxu0
    %573 = vdwg.mxu0
    %v578 = vrot.slane %v532, 4
    %v579 = vrot.slane %v545, 4
    %v580 = vrot.slane %v558, 4
    %v581 = vrot.slane %v571, 4
    %v586 = vadd.f32 %v144, %v578
    %v587 = vadd.f32 %v158, %v579
    %v588 = vadd.f32 %v172, %v580
    %v589 = vadd.f32 %v186, %v581
    %v590 = vxor.u32 %v586, 2147483648
    %v591 = vxor.u32 %v587, 2147483648
    %v592 = vmul.f32 %v590, 1.442695
    %v593 = vpow.pop %v592
    %v594 = vmul.f32 %v591, 1.442695
    %v595 = vpow.pop %v594
    %v596 = vadd.f32 %v593, 1.0
    %v597 = vadd.f32 %v595, 1.0
    %v598 = vrcp.pop %v596
    %v599 = vmul.f32 %v596, %v598
    %v600 = vsub.f32 1.0, %v599
    %v601 = vmul.f32 %v598, %v600
    %v602 = vadd.f32 %v598, %v601
    %vm603 = vweird.f32 %v596
    %vm604 = vweird.f32 %v598
    %vm605 = vmor %vm603, %vm604
    %v606 = vsel %vm605, %v598, %v602
    %v607 = vand.u32 2147483647, %v596
    %vm608 = vcmp.eq.f32.partialorder %v607, 8.507059e+37
    %v609 = vand.u32 %v596, 2147483648
    %v610 = vor.u32 1.1754944e-38, %v609
    %v611 = vsel %vm608, %v610, %v606
    %v612 = vmul.f32 1.0, %v611
    %v613 = vrcp.pop %v597
    %v614 = vmul.f32 %v597, %v613
    %v615 = vsub.f32 1.0, %v614
    %v616 = vmul.f32 %v613, %v615
    %v617 = vadd.f32 %v613, %v616
    %vm618 = vweird.f32 %v597
    %vm619 = vweird.f32 %v613
    %vm620 = vmor %vm618, %vm619
    %v621 = vsel %vm620, %v613, %v617
    %v622 = vand.u32 2147483647, %v597
    %vm623 = vcmp.eq.f32.partialorder %v622, 8.507059e+37
    %v624 = vand.u32 %v597, 2147483648
    %v625 = vor.u32 1.1754944e-38, %v624
    %v626 = vsel %vm623, %v625, %v621
    %v627 = vmul.f32 1.0, %v626
    %v628 = vmul.f32 %v612, %v589
    %v629 = vadd.f32 %v588, %v628
    %v630 = vtanh.pop %v629
    %v631 = vsub.f32 1.0, %v627
    %v632 = vmul.f32 %v631, %v630
    %v634 = vrot.slane %v517, 6
    %v636 = vmul.f32 %v627, %v634
    %v637 = vadd.f32 %v632, %v636
    %v638 = vpack.c.bf16 %v637, %v637
    %v640 = vrot.slane %v638, 2
    %642 = vmatpush.bf16.msra.mxu0 %v366
    %643 = vmatpush.bf16.msra.mxu0 %v362
    %644 = vmatpush.bf16.msra.mxu0 %v358
    %645 = vmatpush.bf16.msra.mxu0 %v354
    %646 = vmatpush.bf16.msra.mxu0 %v350
    %647 = vmatpush.bf16.msra.mxu0 %v346
    %648 = vmatpush.bf16.msra.mxu0 %v342
    %649 = vmatpush.bf16.msra.mxu0 %v338
    %650 = vmatmul.bf16.gmra.mxu0 %v640
    %v651 = vpop.f32.mrf.mxu0
    %v652 = vadd.f32 0.0, %v651
    %v653 = vpop.f32.mrf.mxu0
    %654 = vdwg.mxu0
    %655 = vmatpush.bf16.msra.mxu0 %v367
    %656 = vmatpush.bf16.msra.mxu0 %v363
    %657 = vmatpush.bf16.msra.mxu0 %v359
    %658 = vmatpush.bf16.msra.mxu0 %v355
    %659 = vmatpush.bf16.msra.mxu0 %v351
    %660 = vmatpush.bf16.msra.mxu0 %v347
    %661 = vmatpush.bf16.msra.mxu0 %v343
    %662 = vmatpush.bf16.msra.mxu0 %v339
    %663 = vmatmul.bf16.gmra.mxu0 %v640
    %v664 = vpop.f32.mrf.mxu0
    %v665 = vadd.f32 0.0, %v664
    %v666 = vpop.f32.mrf.mxu0
    %667 = vdwg.mxu0
    %668 = vmatpush.bf16.msra.mxu0 %v368
    %669 = vmatpush.bf16.msra.mxu0 %v364
    %670 = vmatpush.bf16.msra.mxu0 %v360
    %671 = vmatpush.bf16.msra.mxu0 %v356
    %672 = vmatpush.bf16.msra.mxu0 %v352
    %673 = vmatpush.bf16.msra.mxu0 %v348
    %674 = vmatpush.bf16.msra.mxu0 %v344
    %675 = vmatpush.bf16.msra.mxu0 %v340
    %676 = vmatmul.bf16.gmra.mxu0 %v640
    %v677 = vpop.f32.mrf.mxu0
    %v678 = vadd.f32 0.0, %v677
    %v679 = vpop.f32.mrf.mxu0
    %680 = vdwg.mxu0
    %681 = vmatpush.bf16.msra.mxu0 %v369
    %682 = vmatpush.bf16.msra.mxu0 %v365
    %683 = vmatpush.bf16.msra.mxu0 %v361
    %684 = vmatpush.bf16.msra.mxu0 %v357
    %685 = vmatpush.bf16.msra.mxu0 %v353
    %686 = vmatpush.bf16.msra.mxu0 %v349
    %687 = vmatpush.bf16.msra.mxu0 %v345
    %688 = vmatpush.bf16.msra.mxu0 %v341
    %689 = vmatmul.bf16.gmra.mxu0 %v640
    %v690 = vpop.f32.mrf.mxu0
    %v691 = vadd.f32 0.0, %v690
    %v692 = vpop.f32.mrf.mxu0
    %693 = vdwg.mxu0
    %v698 = vrot.slane %v652, 2
    %v699 = vrot.slane %v665, 2
    %v700 = vrot.slane %v678, 2
    %v701 = vrot.slane %v691, 2
    %v706 = vadd.f32 %v144, %v698
    %v707 = vadd.f32 %v158, %v699
    %v708 = vadd.f32 %v172, %v700
    %v709 = vadd.f32 %v186, %v701
    %v710 = vxor.u32 %v706, 2147483648
    %v711 = vxor.u32 %v707, 2147483648
    %v712 = vmul.f32 %v710, 1.442695
    %v713 = vpow.pop %v712
    %v714 = vmul.f32 %v711, 1.442695
    %v715 = vpow.pop %v714
    %v716 = vadd.f32 %v713, 1.0
    %v717 = vadd.f32 %v715, 1.0
    %v718 = vrcp.pop %v716
    %v719 = vmul.f32 %v716, %v718
    %v720 = vsub.f32 1.0, %v719
    %v721 = vmul.f32 %v718, %v720
    %v722 = vadd.f32 %v718, %v721
    %vm723 = vweird.f32 %v716
    %vm724 = vweird.f32 %v718
    %vm725 = vmor %vm723, %vm724
    %v726 = vsel %vm725, %v718, %v722
    %v727 = vand.u32 2147483647, %v716
    %vm728 = vcmp.eq.f32.partialorder %v727, 8.507059e+37
    %v729 = vand.u32 %v716, 2147483648
    %v730 = vor.u32 1.1754944e-38, %v729
    %v731 = vsel %vm728, %v730, %v726
    %v732 = vmul.f32 1.0, %v731
    %v733 = vrcp.pop %v717
    %v734 = vmul.f32 %v717, %v733
    %v735 = vsub.f32 1.0, %v734
    %v736 = vmul.f32 %v733, %v735
    %v737 = vadd.f32 %v733, %v736
    %vm738 = vweird.f32 %v717
    %vm739 = vweird.f32 %v733
    %vm740 = vmor %vm738, %vm739
    %v741 = vsel %vm740, %v733, %v737
    %v742 = vand.u32 2147483647, %v717
    %vm743 = vcmp.eq.f32.partialorder %v742, 8.507059e+37
    %v744 = vand.u32 %v717, 2147483648
    %v745 = vor.u32 1.1754944e-38, %v744
    %v746 = vsel %vm743, %v745, %v741
    %v747 = vmul.f32 1.0, %v746
    %v748 = vmul.f32 %v732, %v709
    %v749 = vadd.f32 %v708, %v748
    %v750 = vtanh.pop %v749
    %v751 = vsub.f32 1.0, %v747
    %v752 = vmul.f32 %v751, %v750
    %v754 = vrot.slane %v637, 6
    %v756 = vmul.f32 %v747, %v754
    %v757 = vadd.f32 %v752, %v756
    %v758 = vpack.c.bf16 %v757, %v757
    %v760 = vrot.slane %v758, 3
    %762 = vmatpush.bf16.msra.mxu0 %v366
    %763 = vmatpush.bf16.msra.mxu0 %v362
    %764 = vmatpush.bf16.msra.mxu0 %v358
    %765 = vmatpush.bf16.msra.mxu0 %v354
    %766 = vmatpush.bf16.msra.mxu0 %v350
    %767 = vmatpush.bf16.msra.mxu0 %v346
    %768 = vmatpush.bf16.msra.mxu0 %v342
    %769 = vmatpush.bf16.msra.mxu0 %v338
    %770 = vmatmul.bf16.gmra.mxu0 %v760
    %v771 = vpop.f32.mrf.mxu0
    %v772 = vadd.f32 0.0, %v771
    %v773 = vpop.f32.mrf.mxu0
    %774 = vdwg.mxu0
    %775 = vmatpush.bf16.msra.mxu0 %v367
    %776 = vmatpush.bf16.msra.mxu0 %v363
    %777 = vmatpush.bf16.msra.mxu0 %v359
    %778 = vmatpush.bf16.msra.mxu0 %v355
    %779 = vmatpush.bf16.msra.mxu0 %v351
    %780 = vmatpush.bf16.msra.mxu0 %v347
    %781 = vmatpush.bf16.msra.mxu0 %v343
    %782 = vmatpush.bf16.msra.mxu0 %v339
    %783 = vmatmul.bf16.gmra.mxu0 %v760
    %v784 = vpop.f32.mrf.mxu0
    %v785 = vadd.f32 0.0, %v784
    %v786 = vpop.f32.mrf.mxu0
    %787 = vdwg.mxu0
    %788 = vmatpush.bf16.msra.mxu0 %v368
    %789 = vmatpush.bf16.msra.mxu0 %v364
    %790 = vmatpush.bf16.msra.mxu0 %v360
    %791 = vmatpush.bf16.msra.mxu0 %v356
    %792 = vmatpush.bf16.msra.mxu0 %v352
    %793 = vmatpush.bf16.msra.mxu0 %v348
    %794 = vmatpush.bf16.msra.mxu0 %v344
    %795 = vmatpush.bf16.msra.mxu0 %v340
    %796 = vmatmul.bf16.gmra.mxu0 %v760
    %v797 = vpop.f32.mrf.mxu0
    %v798 = vadd.f32 0.0, %v797
    %v799 = vpop.f32.mrf.mxu0
    %800 = vdwg.mxu0
    %801 = vmatpush.bf16.msra.mxu0 %v369
    %802 = vmatpush.bf16.msra.mxu0 %v365
    %803 = vmatpush.bf16.msra.mxu0 %v361
    %804 = vmatpush.bf16.msra.mxu0 %v357
    %805 = vmatpush.bf16.msra.mxu0 %v353
    %806 = vmatpush.bf16.msra.mxu0 %v349
    %807 = vmatpush.bf16.msra.mxu0 %v345
    %808 = vmatpush.bf16.msra.mxu0 %v341
    %809 = vmatmul.bf16.gmra.mxu0 %v760
    %v810 = vpop.f32.mrf.mxu0
    %v811 = vadd.f32 0.0, %v810
    %v812 = vpop.f32.mrf.mxu0
    %813 = vdwg.mxu0
    %v814 = vadd.f32 %v146, %v772
    %v815 = vadd.f32 %v160, %v785
    %v816 = vadd.f32 %v174, %v798
    %v817 = vadd.f32 %v188, %v811
    %v818 = vxor.u32 %v814, 2147483648
    %v819 = vxor.u32 %v815, 2147483648
    %v820 = vmul.f32 %v818, 1.442695
    %v821 = vpow.pop %v820
    %v822 = vmul.f32 %v819, 1.442695
    %v823 = vpow.pop %v822
    %v824 = vadd.f32 %v821, 1.0
    %v825 = vadd.f32 %v823, 1.0
    %v826 = vrcp.pop %v824
    %v827 = vmul.f32 %v824, %v826
    %v828 = vsub.f32 1.0, %v827
    %v829 = vmul.f32 %v826, %v828
    %v830 = vadd.f32 %v826, %v829
    %vm831 = vweird.f32 %v824
    %vm832 = vweird.f32 %v826
    %vm833 = vmor %vm831, %vm832
    %v834 = vsel %vm833, %v826, %v830
    %v835 = vand.u32 2147483647, %v824
    %vm836 = vcmp.eq.f32.partialorder %v835, 8.507059e+37
    %v837 = vand.u32 %v824, 2147483648
    %v838 = vor.u32 1.1754944e-38, %v837
    %v839 = vsel %vm836, %v838, %v834
    %v840 = vmul.f32 1.0, %v839
    %v841 = vrcp.pop %v825
    %v842 = vmul.f32 %v825, %v841
    %v843 = vsub.f32 1.0, %v842
    %v844 = vmul.f32 %v841, %v843
    %v845 = vadd.f32 %v841, %v844
    %vm846 = vweird.f32 %v825
    %vm847 = vweird.f32 %v841
    %vm848 = vmor %vm846, %vm847
    %v849 = vsel %vm848, %v841, %v845
    %v850 = vand.u32 2147483647, %v825
    %vm851 = vcmp.eq.f32.partialorder %v850, 8.507059e+37
    %v852 = vand.u32 %v825, 2147483648
    %v853 = vor.u32 1.1754944e-38, %v852
    %v854 = vsel %vm851, %v853, %v849
    %v855 = vmul.f32 1.0, %v854
    %v856 = vmul.f32 %v840, %v817
    %v857 = vadd.f32 %v816, %v856
    %v858 = vtanh.pop %v857
    %v859 = vsub.f32 1.0, %v855
    %v860 = vmul.f32 %v859, %v858
    %v862 = vrot.slane %v757, 6
    %v864 = vmul.f32 %v855, %v862
    %v865 = vadd.f32 %v860, %v864
    %v866 = vpack.c.bf16 %v865, %v865
    %867 = vmatpush.bf16.msra.mxu0 %v366
    %868 = vmatpush.bf16.msra.mxu0 %v362
    %869 = vmatpush.bf16.msra.mxu0 %v358
    %870 = vmatpush.bf16.msra.mxu0 %v354
    %871 = vmatpush.bf16.msra.mxu0 %v350
    %872 = vmatpush.bf16.msra.mxu0 %v346
    %873 = vmatpush.bf16.msra.mxu0 %v342
    %874 = vmatpush.bf16.msra.mxu0 %v338
    %875 = vmatmul.bf16.gmra.mxu0 %v866
    %v876 = vpop.f32.mrf.mxu0
    %v877 = vadd.f32 0.0, %v876
    %v878 = vpop.f32.mrf.mxu0
    %879 = vdwg.mxu0
    %880 = vmatpush.bf16.msra.mxu0 %v367
    %881 = vmatpush.bf16.msra.mxu0 %v363
    %882 = vmatpush.bf16.msra.mxu0 %v359
    %883 = vmatpush.bf16.msra.mxu0 %v355
    %884 = vmatpush.bf16.msra.mxu0 %v351
    %885 = vmatpush.bf16.msra.mxu0 %v347
    %886 = vmatpush.bf16.msra.mxu0 %v343
    %887 = vmatpush.bf16.msra.mxu0 %v339
    %888 = vmatmul.bf16.gmra.mxu0 %v866
    %v889 = vpop.f32.mrf.mxu0
    %v890 = vadd.f32 0.0, %v889
    %v891 = vpop.f32.mrf.mxu0
    %892 = vdwg.mxu0
    %893 = vmatpush.bf16.msra.mxu0 %v368
    %894 = vmatpush.bf16.msra.mxu0 %v364
    %895 = vmatpush.bf16.msra.mxu0 %v360
    %896 = vmatpush.bf16.msra.mxu0 %v356
    %897 = vmatpush.bf16.msra.mxu0 %v352
    %898 = vmatpush.bf16.msra.mxu0 %v348
    %899 = vmatpush.bf16.msra.mxu0 %v344
    %900 = vmatpush.bf16.msra.mxu0 %v340
    %901 = vmatmul.bf16.gmra.mxu0 %v866
    %v902 = vpop.f32.mrf.mxu0
    %v903 = vadd.f32 0.0, %v902
    %v904 = vpop.f32.mrf.mxu0
    %905 = vdwg.mxu0
    %906 = vmatpush.bf16.msra.mxu0 %v369
    %907 = vmatpush.bf16.msra.mxu0 %v365
    %908 = vmatpush.bf16.msra.mxu0 %v361
    %909 = vmatpush.bf16.msra.mxu0 %v357
    %910 = vmatpush.bf16.msra.mxu0 %v353
    %911 = vmatpush.bf16.msra.mxu0 %v349
    %912 = vmatpush.bf16.msra.mxu0 %v345
    %913 = vmatpush.bf16.msra.mxu0 %v341
    %914 = vmatmul.bf16.gmra.mxu0 %v866
    %v915 = vpop.f32.mrf.mxu0
    %v916 = vadd.f32 0.0, %v915
    %v917 = vpop.f32.mrf.mxu0
    %918 = vdwg.mxu0
    %v923 = vrot.slane %v877, 6
    %v924 = vrot.slane %v890, 6
    %v925 = vrot.slane %v903, 6
    %v926 = vrot.slane %v916, 6
    %v931 = vadd.f32 %v146, %v923
    %v932 = vadd.f32 %v160, %v924
    %v933 = vadd.f32 %v174, %v925
    %v934 = vadd.f32 %v188, %v926
    %v935 = vxor.u32 %v931, 2147483648
    %v936 = vxor.u32 %v932, 2147483648
    %v937 = vmul.f32 %v935, 1.442695
    %v938 = vpow.pop %v937
    %v939 = vmul.f32 %v936, 1.442695
    %v940 = vpow.pop %v939
    %v941 = vadd.f32 %v938, 1.0
    %v942 = vadd.f32 %v940, 1.0
    %v943 = vrcp.pop %v941
    %v944 = vmul.f32 %v941, %v943
    %v945 = vsub.f32 1.0, %v944
    %v946 = vmul.f32 %v943, %v945
    %v947 = vadd.f32 %v943, %v946
    %vm948 = vweird.f32 %v941
    %vm949 = vweird.f32 %v943
    %vm950 = vmor %vm948, %vm949
    %v951 = vsel %vm950, %v943, %v947
    %v952 = vand.u32 2147483647, %v941
    %vm953 = vcmp.eq.f32.partialorder %v952, 8.507059e+37
    %v954 = vand.u32 %v941, 2147483648
    %v955 = vor.u32 1.1754944e-38, %v954
    %v956 = vsel %vm953, %v955, %v951
    %v957 = vmul.f32 1.0, %v956
    %v958 = vrcp.pop %v942
    %v959 = vmul.f32 %v942, %v958
    %v960 = vsub.f32 1.0, %v959
    %v961 = vmul.f32 %v958, %v960
    %v962 = vadd.f32 %v958, %v961
    %vm963 = vweird.f32 %v942
    %vm964 = vweird.f32 %v958
    %vm965 = vmor %vm963, %vm964
    %v966 = vsel %vm965, %v958, %v962
    %v967 = vand.u32 2147483647, %v942
    %vm968 = vcmp.eq.f32.partialorder %v967, 8.507059e+37
    %v969 = vand.u32 %v942, 2147483648
    %v970 = vor.u32 1.1754944e-38, %v969
    %v971 = vsel %vm968, %v970, %v966
    %v972 = vmul.f32 1.0, %v971
    %v973 = vmul.f32 %v957, %v934
    %v974 = vadd.f32 %v933, %v973
    %v975 = vtanh.pop %v974
    %v976 = vsub.f32 1.0, %v972
    %v977 = vmul.f32 %v976, %v975
    %v979 = vrot.slane %v865, 6
    %v981 = vmul.f32 %v972, %v979
    %v982 = vadd.f32 %v977, %v981
    %v983 = vpack.c.bf16 %v982, %v982
    %v985 = vrot.slane %v983, 1
    %987 = vmatpush.bf16.msra.mxu0 %v366
    %988 = vmatpush.bf16.msra.mxu0 %v362
    %989 = vmatpush.bf16.msra.mxu0 %v358
    %990 = vmatpush.bf16.msra.mxu0 %v354
    %991 = vmatpush.bf16.msra.mxu0 %v350
    %992 = vmatpush.bf16.msra.mxu0 %v346
    %993 = vmatpush.bf16.msra.mxu0 %v342
    %994 = vmatpush.bf16.msra.mxu0 %v338
    %995 = vmatmul.bf16.gmra.mxu0 %v985
    %v996 = vpop.f32.mrf.mxu0
    %v997 = vadd.f32 0.0, %v996
    %v998 = vpop.f32.mrf.mxu0
    %999 = vdwg.mxu0
    %1000 = vmatpush.bf16.msra.mxu0 %v367
    %1001 = vmatpush.bf16.msra.mxu0 %v363
    %1002 = vmatpush.bf16.msra.mxu0 %v359
    %1003 = vmatpush.bf16.msra.mxu0 %v355
    %1004 = vmatpush.bf16.msra.mxu0 %v351
    %1005 = vmatpush.bf16.msra.mxu0 %v347
    %1006 = vmatpush.bf16.msra.mxu0 %v343
    %1007 = vmatpush.bf16.msra.mxu0 %v339
    %1008 = vmatmul.bf16.gmra.mxu0 %v985
    %v1009 = vpop.f32.mrf.mxu0
    %v1010 = vadd.f32 0.0, %v1009
    %v1011 = vpop.f32.mrf.mxu0
    %1012 = vdwg.mxu0
    %1013 = vmatpush.bf16.msra.mxu0 %v368
    %1014 = vmatpush.bf16.msra.mxu0 %v364
    %1015 = vmatpush.bf16.msra.mxu0 %v360
    %1016 = vmatpush.bf16.msra.mxu0 %v356
    %1017 = vmatpush.bf16.msra.mxu0 %v352
    %1018 = vmatpush.bf16.msra.mxu0 %v348
    %1019 = vmatpush.bf16.msra.mxu0 %v344
    %1020 = vmatpush.bf16.msra.mxu0 %v340
    %1021 = vmatmul.bf16.gmra.mxu0 %v985
    %v1022 = vpop.f32.mrf.mxu0
    %v1023 = vadd.f32 0.0, %v1022
    %v1024 = vpop.f32.mrf.mxu0
    %1025 = vdwg.mxu0
    %1026 = vmatpush.bf16.msra.mxu0 %v369
    %1027 = vmatpush.bf16.msra.mxu0 %v365
    %1028 = vmatpush.bf16.msra.mxu0 %v361
    %1029 = vmatpush.bf16.msra.mxu0 %v357
    %1030 = vmatpush.bf16.msra.mxu0 %v353
    %1031 = vmatpush.bf16.msra.mxu0 %v349
    %1032 = vmatpush.bf16.msra.mxu0 %v345
    %1033 = vmatpush.bf16.msra.mxu0 %v341
    %1034 = vmatmul.bf16.gmra.mxu0 %v985
    %v1035 = vpop.f32.mrf.mxu0
    %v1036 = vadd.f32 0.0, %v1035
    %v1037 = vpop.f32.mrf.mxu0
    %1038 = vdwg.mxu0
    %v1043 = vrot.slane %v997, 4
    %v1044 = vrot.slane %v1010, 4
    %v1045 = vrot.slane %v1023, 4
    %v1046 = vrot.slane %v1036, 4
    %v1051 = vadd.f32 %v146, %v1043
    %v1052 = vadd.f32 %v160, %v1044
    %v1053 = vadd.f32 %v174, %v1045
    %v1054 = vadd.f32 %v188, %v1046
    %v1055 = vxor.u32 %v1051, 2147483648
    %v1056 = vxor.u32 %v1052, 2147483648
    %v1057 = vmul.f32 %v1055, 1.442695
    %v1058 = vpow.pop %v1057
    %v1059 = vmul.f32 %v1056, 1.442695
    %v1060 = vpow.pop %v1059
    %v1061 = vadd.f32 %v1058, 1.0
    %v1062 = vadd.f32 %v1060, 1.0
    %v1063 = vrcp.pop %v1061
    %v1064 = vmul.f32 %v1061, %v1063
    %v1065 = vsub.f32 1.0, %v1064
    %v1066 = vmul.f32 %v1063, %v1065
    %v1067 = vadd.f32 %v1063, %v1066
    %vm1068 = vweird.f32 %v1061
    %vm1069 = vweird.f32 %v1063
    %vm1070 = vmor %vm1068, %vm1069
    %v1071 = vsel %vm1070, %v1063, %v1067
    %v1072 = vand.u32 2147483647, %v1061
    %vm1073 = vcmp.eq.f32.partialorder %v1072, 8.507059e+37
    %v1074 = vand.u32 %v1061, 2147483648
    %v1075 = vor.u32 1.1754944e-38, %v1074
    %v1076 = vsel %vm1073, %v1075, %v1071
    %v1077 = vmul.f32 1.0, %v1076
    %v1078 = vrcp.pop %v1062
    %v1079 = vmul.f32 %v1062, %v1078
    %v1080 = vsub.f32 1.0, %v1079
    %v1081 = vmul.f32 %v1078, %v1080
    %v1082 = vadd.f32 %v1078, %v1081
    %vm1083 = vweird.f32 %v1062
    %vm1084 = vweird.f32 %v1078
    %vm1085 = vmor %vm1083, %vm1084
    %v1086 = vsel %vm1085, %v1078, %v1082
    %v1087 = vand.u32 2147483647, %v1062
    %vm1088 = vcmp.eq.f32.partialorder %v1087, 8.507059e+37
    %v1089 = vand.u32 %v1062, 2147483648
    %v1090 = vor.u32 1.1754944e-38, %v1089
    %v1091 = vsel %vm1088, %v1090, %v1086
    %v1092 = vmul.f32 1.0, %v1091
    %v1093 = vmul.f32 %v1077, %v1054
    %v1094 = vadd.f32 %v1053, %v1093
    %v1095 = vtanh.pop %v1094
    %v1096 = vsub.f32 1.0, %v1092
    %v1097 = vmul.f32 %v1096, %v1095
    %v1099 = vrot.slane %v982, 6
    %v1101 = vmul.f32 %v1092, %v1099
    %v1102 = vadd.f32 %v1097, %v1101
    %v1103 = vpack.c.bf16 %v1102, %v1102
    %v1105 = vrot.slane %v1103, 2
    %1107 = vmatpush.bf16.msra.mxu0 %v366
    %1108 = vmatpush.bf16.msra.mxu0 %v362
    %1109 = vmatpush.bf16.msra.mxu0 %v358
    %1110 = vmatpush.bf16.msra.mxu0 %v354
    %1111 = vmatpush.bf16.msra.mxu0 %v350
    %1112 = vmatpush.bf16.msra.mxu0 %v346
    %1113 = vmatpush.bf16.msra.mxu0 %v342
    %1114 = vmatpush.bf16.msra.mxu0 %v338
    %1115 = vmatmul.bf16.gmra.mxu0 %v1105
    %v1116 = vpop.f32.mrf.mxu0
    %v1117 = vadd.f32 0.0, %v1116
    %v1118 = vpop.f32.mrf.mxu0
    %1119 = vdwg.mxu0
    %1120 = vmatpush.bf16.msra.mxu0 %v367
    %1121 = vmatpush.bf16.msra.mxu0 %v363
    %1122 = vmatpush.bf16.msra.mxu0 %v359
    %1123 = vmatpush.bf16.msra.mxu0 %v355
    %1124 = vmatpush.bf16.msra.mxu0 %v351
    %1125 = vmatpush.bf16.msra.mxu0 %v347
    %1126 = vmatpush.bf16.msra.mxu0 %v343
    %1127 = vmatpush.bf16.msra.mxu0 %v339
    %1128 = vmatmul.bf16.gmra.mxu0 %v1105
    %v1129 = vpop.f32.mrf.mxu0
    %v1130 = vadd.f32 0.0, %v1129
    %v1131 = vpop.f32.mrf.mxu0
    %1132 = vdwg.mxu0
    %1133 = vmatpush.bf16.msra.mxu0 %v368
    %1134 = vmatpush.bf16.msra.mxu0 %v364
    %1135 = vmatpush.bf16.msra.mxu0 %v360
    %1136 = vmatpush.bf16.msra.mxu0 %v356
    %1137 = vmatpush.bf16.msra.mxu0 %v352
    %1138 = vmatpush.bf16.msra.mxu0 %v348
    %1139 = vmatpush.bf16.msra.mxu0 %v344
    %1140 = vmatpush.bf16.msra.mxu0 %v340
    %1141 = vmatmul.bf16.gmra.mxu0 %v1105
    %v1142 = vpop.f32.mrf.mxu0
    %v1143 = vadd.f32 0.0, %v1142
    %v1144 = vpop.f32.mrf.mxu0
    %1145 = vdwg.mxu0
    %1146 = vmatpush.bf16.msra.mxu0 %v369
    %1147 = vmatpush.bf16.msra.mxu0 %v365
    %1148 = vmatpush.bf16.msra.mxu0 %v361
    %1149 = vmatpush.bf16.msra.mxu0 %v357
    %1150 = vmatpush.bf16.msra.mxu0 %v353
    %1151 = vmatpush.bf16.msra.mxu0 %v349
    %1152 = vmatpush.bf16.msra.mxu0 %v345
    %1153 = vmatpush.bf16.msra.mxu0 %v341
    %1154 = vmatmul.bf16.gmra.mxu0 %v1105
    %v1155 = vpop.f32.mrf.mxu0
    %v1156 = vadd.f32 0.0, %v1155
    %v1157 = vpop.f32.mrf.mxu0
    %1158 = vdwg.mxu0
    %v1163 = vrot.slane %v1117, 2
    %v1164 = vrot.slane %v1130, 2
    %v1165 = vrot.slane %v1143, 2
    %v1166 = vrot.slane %v1156, 2
    %v1171 = vadd.f32 %v146, %v1163
    %v1172 = vadd.f32 %v160, %v1164
    %v1173 = vadd.f32 %v174, %v1165
    %v1174 = vadd.f32 %v188, %v1166
    %v1175 = vxor.u32 %v1171, 2147483648
    %v1176 = vxor.u32 %v1172, 2147483648
    %v1177 = vmul.f32 %v1175, 1.442695
    %v1178 = vpow.pop %v1177
    %v1179 = vmul.f32 %v1176, 1.442695
    %v1180 = vpow.pop %v1179
    %v1181 = vadd.f32 %v1178, 1.0
    %v1182 = vadd.f32 %v1180, 1.0
    %v1183 = vrcp.pop %v1181
    %v1184 = vmul.f32 %v1181, %v1183
    %v1185 = vsub.f32 1.0, %v1184
    %v1186 = vmul.f32 %v1183, %v1185
    %v1187 = vadd.f32 %v1183, %v1186
    %vm1188 = vweird.f32 %v1181
    %vm1189 = vweird.f32 %v1183
    %vm1190 = vmor %vm1188, %vm1189
    %v1191 = vsel %vm1190, %v1183, %v1187
    %v1192 = vand.u32 2147483647, %v1181
    %vm1193 = vcmp.eq.f32.partialorder %v1192, 8.507059e+37
    %v1194 = vand.u32 %v1181, 2147483648
    %v1195 = vor.u32 1.1754944e-38, %v1194
    %v1196 = vsel %vm1193, %v1195, %v1191
    %v1197 = vmul.f32 1.0, %v1196
    %v1198 = vrcp.pop %v1182
    %v1199 = vmul.f32 %v1182, %v1198
    %v1200 = vsub.f32 1.0, %v1199
    %v1201 = vmul.f32 %v1198, %v1200
    %v1202 = vadd.f32 %v1198, %v1201
    %vm1203 = vweird.f32 %v1182
    %vm1204 = vweird.f32 %v1198
    %vm1205 = vmor %vm1203, %vm1204
    %v1206 = vsel %vm1205, %v1198, %v1202
    %v1207 = vand.u32 2147483647, %v1182
    %vm1208 = vcmp.eq.f32.partialorder %v1207, 8.507059e+37
    %v1209 = vand.u32 %v1182, 2147483648
    %v1210 = vor.u32 1.1754944e-38, %v1209
    %v1211 = vsel %vm1208, %v1210, %v1206
    %v1212 = vmul.f32 1.0, %v1211
    %v1213 = vmul.f32 %v1197, %v1174
    %v1214 = vadd.f32 %v1173, %v1213
    %v1215 = vtanh.pop %v1214
    %v1216 = vsub.f32 1.0, %v1212
    %v1217 = vmul.f32 %v1216, %v1215
    %v1219 = vrot.slane %v1102, 6
    %v1221 = vmul.f32 %v1212, %v1219
    %v1222 = vadd.f32 %v1217, %v1221
    %v1223 = vpack.c.bf16 %v1222, %v1222
    %v1225 = vrot.slane %v1223, 3
    %1227 = vmatpush.bf16.msra.mxu0 %v366
    %1228 = vmatpush.bf16.msra.mxu0 %v362
    %1229 = vmatpush.bf16.msra.mxu0 %v358
    %1230 = vmatpush.bf16.msra.mxu0 %v354
    %1231 = vmatpush.bf16.msra.mxu0 %v350
    %1232 = vmatpush.bf16.msra.mxu0 %v346
    %1233 = vmatpush.bf16.msra.mxu0 %v342
    %1234 = vmatpush.bf16.msra.mxu0 %v338
    %1235 = vmatmul.bf16.gmra.mxu0 %v1225
    %v1236 = vpop.f32.mrf.mxu0
    %v1237 = vadd.f32 0.0, %v1236
    %v1238 = vpop.f32.mrf.mxu0
    %1239 = vdwg.mxu0
    %1240 = vmatpush.bf16.msra.mxu0 %v367
    %1241 = vmatpush.bf16.msra.mxu0 %v363
    %1242 = vmatpush.bf16.msra.mxu0 %v359
    %1243 = vmatpush.bf16.msra.mxu0 %v355
    %1244 = vmatpush.bf16.msra.mxu0 %v351
    %1245 = vmatpush.bf16.msra.mxu0 %v347
    %1246 = vmatpush.bf16.msra.mxu0 %v343
    %1247 = vmatpush.bf16.msra.mxu0 %v339
    %1248 = vmatmul.bf16.gmra.mxu0 %v1225
    %v1249 = vpop.f32.mrf.mxu0
    %v1250 = vadd.f32 0.0, %v1249
    %v1251 = vpop.f32.mrf.mxu0
    %1252 = vdwg.mxu0
    %1253 = vmatpush.bf16.msra.mxu0 %v368
    %1254 = vmatpush.bf16.msra.mxu0 %v364
    %1255 = vmatpush.bf16.msra.mxu0 %v360
    %1256 = vmatpush.bf16.msra.mxu0 %v356
    %1257 = vmatpush.bf16.msra.mxu0 %v352
    %1258 = vmatpush.bf16.msra.mxu0 %v348
    %1259 = vmatpush.bf16.msra.mxu0 %v344
    %1260 = vmatpush.bf16.msra.mxu0 %v340
    %1261 = vmatmul.bf16.gmra.mxu0 %v1225
    %v1262 = vpop.f32.mrf.mxu0
    %v1263 = vadd.f32 0.0, %v1262
    %v1264 = vpop.f32.mrf.mxu0
    %1265 = vdwg.mxu0
    %1266 = vmatpush.bf16.msra.mxu0 %v369
    %1267 = vmatpush.bf16.msra.mxu0 %v365
    %1268 = vmatpush.bf16.msra.mxu0 %v361
    %1269 = vmatpush.bf16.msra.mxu0 %v357
    %1270 = vmatpush.bf16.msra.mxu0 %v353
    %1271 = vmatpush.bf16.msra.mxu0 %v349
    %1272 = vmatpush.bf16.msra.mxu0 %v345
    %1273 = vmatpush.bf16.msra.mxu0 %v341
    %1274 = vmatmul.bf16.gmra.mxu0 %v1225
    %v1275 = vpop.f32.mrf.mxu0
    %v1276 = vadd.f32 0.0, %v1275
    %v1277 = vpop.f32.mrf.mxu0
    %1278 = vdwg.mxu0
    %v1283 = vrot.slane %v1237, 2
    %v1284 = vrot.slane %v1250, 2
    %v1285 = vrot.slane %v1263, 2
    %v1286 = vrot.slane %v1276, 2
    %v1291 = vadd.f32 %v146, %v1283
    %v1292 = vadd.f32 %v160, %v1284
    %v1293 = vadd.f32 %v174, %v1285
    %v1294 = vadd.f32 %v188, %v1286
    %v1295 = vxor.u32 %v1291, 2147483648
    %v1296 = vxor.u32 %v1292, 2147483648
    %v1297 = vmul.f32 %v1295, 1.442695
    %v1298 = vpow.pop %v1297
    %v1299 = vmul.f32 %v1296, 1.442695
    %v1300 = vpow.pop %v1299
    %v1301 = vadd.f32 %v1298, 1.0
    %v1302 = vadd.f32 %v1300, 1.0
    %v1303 = vrcp.pop %v1301
    %v1304 = vmul.f32 %v1301, %v1303
    %v1305 = vsub.f32 1.0, %v1304
    %v1306 = vmul.f32 %v1303, %v1305
    %v1307 = vadd.f32 %v1303, %v1306
    %vm1308 = vweird.f32 %v1301
    %vm1309 = vweird.f32 %v1303
    %vm1310 = vmor %vm1308, %vm1309
    %v1311 = vsel %vm1310, %v1303, %v1307
    %v1312 = vand.u32 2147483647, %v1301
    %vm1313 = vcmp.eq.f32.partialorder %v1312, 8.507059e+37
    %v1314 = vand.u32 %v1301, 2147483648
    %v1315 = vor.u32 1.1754944e-38, %v1314
    %v1316 = vsel %vm1313, %v1315, %v1311
    %v1317 = vmul.f32 1.0, %v1316
    %v1318 = vrcp.pop %v1302
    %v1319 = vmul.f32 %v1302, %v1318
    %v1320 = vsub.f32 1.0, %v1319
    %v1321 = vmul.f32 %v1318, %v1320
    %v1322 = vadd.f32 %v1318, %v1321
    %vm1323 = vweird.f32 %v1302
    %vm1324 = vweird.f32 %v1318
    %vm1325 = vmor %vm1323, %vm1324
    %v1326 = vsel %vm1325, %v1318, %v1322
    %v1327 = vand.u32 2147483647, %v1302
    %vm1328 = vcmp.eq.f32.partialorder %v1327, 8.507059e+37
    %v1329 = vand.u32 %v1302, 2147483648
    %v1330 = vor.u32 1.1754944e-38, %v1329
    %v1331 = vsel %vm1328, %v1330, %v1326
    %v1332 = vmul.f32 1.0, %v1331
    %v1333 = vmul.f32 %v1317, %v1294
    %v1334 = vadd.f32 %v1293, %v1333
    %v1335 = vtanh.pop %v1334
    %v1336 = vsub.f32 1.0, %v1332
    %v1337 = vmul.f32 %v1336, %v1335
    %v1338 = vmul.f32 %v1332, %v1222
    %v1339 = vadd.f32 %v1337, %v1338
    %1341 = vrot.lane.b32.xlu0 %v1339, 64
    %v1342 = vpop.permute.xlu0 %1341
    %vm1344 = vcmask 523270
    %v1345 = vsel %vm1344, %v1342, 0.0
    %1346 = vadd.xlane.f32.xlu0 %v1345
    %v1347 = vpop.xlane.xlu0 %1346
    %v1348 = vrcp.pop 64.0
    %v1349 = vmul.f32 64.0, %v1348
    %v1350 = vsub.f32 1.0, %v1349
    %v1351 = vmul.f32 %v1348, %v1350
    %v1352 = vadd.f32 %v1348, %v1351
    %vm1353 = vweird.f32 %v1348
    %v1354 = vsel %vm1353, %v1348, %v1352
    %v1355 = vmul.f32 %v1347, %v1354
    %v1356 = vsub.f32 %v1339, %v1355
    %v1357 = vmul.f32 %v1356, %v1356
    %1359 = vrot.lane.b32.xlu0 %v1357, 64
    %v1360 = vpop.permute.xlu0 %1359
    %v1362 = vsel %vm1344, %v1360, 0.0
    %1363 = vadd.xlane.f32.xlu0 %v1362
    %v1364 = vpop.xlane.xlu0 %1363
    %v1365 = vmul.f32 %v1364, %v1354
    %v1366 = vadd.f32 %v1365, 1e-05
    %v1367 = vrsqrt.pop %v1366
    %v1368 = vmul.f32 %v1367, %v1366
    %v1369 = vmul.f32 %v1368, %v1367
    %v1370 = vmul.f32 0.5, %v1369
    %v1371 = vsub.f32 1.5, %v1370
    %v1372 = vmul.f32 %v1367, %v1371
    %vm1373 = vweird.f32 %v1366
    %vm1374 = vweird.f32 %v1367
    %vm1375 = vmor %vm1373, %vm1374
    %v1376 = vsel %vm1375, %v1367, %v1372
    %v1377 = vmul.f32 %v1356, %v1376
    %v1378 = vld [vmem:[%s4] sm:$0x1]
    %v1379 = vperm.slane %v1378, 0
    %1381 = vrot.lane.b32.xlu0 %v1379, 64
    %v1382 = vpop.permute.xlu0 %1381
    %v1384 = vmul.f32 %v1377, %v1382
    %v1385 = vld [vmem:[%s4 + $0x1] sm:$0x1]
    %v1386 = vperm.slane %v1385, 0
    %1388 = vrot.lane.b32.xlu0 %v1386, 64
    %v1389 = vpop.permute.xlu0 %1388
    %v1391 = vadd.f32 %v1384, %v1389
    %v1392 = vld [vmem:[#allocation5] sm:$0xff]
    %v1393 = vld [vmem:[#allocation5 + $0x8] sm:$0xff]
    %v1394 = vld [vmem:[#allocation5 + $0x10] sm:$0xff]
    %v1395 = vld [vmem:[#allocation5 + $0x18] sm:$0xff]
    %v1396 = vld [vmem:[#allocation5 + $0x20] sm:$0xff]
    %v1397 = vld [vmem:[#allocation5 + $0x28] sm:$0xff]
    %v1398 = vld [vmem:[#allocation5 + $0x30] sm:$0xff]
    %v1399 = vld [vmem:[#allocation5 + $0x38] sm:$0xff]
    %v1400 = vld [vmem:[%s6] sm:$0x1]
    %v1402 = vperm.slane %v1400, 0
    %v1405 = vrot.slane %v1391, 6
    %1406 = vrot.lane.b32.xlu0 %v1405, 64
    %v1407 = vpop.permute.xlu0 %1406
    %vm1408 = vcmask 523264
    %v1409 = vsel %vm1408, %v1407, 0
    %1411 = vmatpush.msra.mxu0 0.0
    %1412 = vmatpush.msra.mxu0 0.0
    %1413 = vmatpush.msra.mxu0 0.0
    %1414 = vmatpush.msra.mxu0 0.0
    %1415 = vmatpush.msra.mxu0 0.0
    %1416 = vmatpush.msra.mxu0 0.0
    %1417 = vmatpush.msra.mxu0 0.0
    %1418 = vmatpush.msra.mxu0 0.0
    %1419 = vmatpush.msra.mxu0 %v1399
    %1420 = vmatpush.msra.mxu0 %v1398
    %1421 = vmatpush.msra.mxu0 %v1397
    %1422 = vmatpush.msra.mxu0 %v1396
    %1423 = vmatpush.msra.mxu0 %v1395
    %1424 = vmatpush.msra.mxu0 %v1394
    %1425 = vmatpush.msra.mxu0 %v1393
    %1426 = vmatpush.msra.mxu0 %v1392
    %1427 = vmatmul.f32.gmra.mxu0 %v1409
    %v1428 = vpop.f32.mrf.mxu0
    %v1429 = vadd.f32 %v1402, %v1428
    %1430 = vdwg.mxu0
    %1431 = vst [vmem:[#allocation7] sm:$0x3] %v1429
    // Predicated region
    $region38: #{tpu_custom_call.1} parent=1 // pred_check
      _
    $region39: #{tpu_custom_call.1} parent=1 // pred_check_branch
      %1433 = sbr.rel (0) target = $region41
    $region40: #{tpu_custom_call.1} parent=1 // pred_region
      %1435 = vsyncadd [#allocation4], 0
      %s1437 = sshll.u32 [#allocation7], 4
      %s1438 = int_to_ptr.vmem [resolvable:$true] %s1437
      %s1439 = sshll.u32 %s7, 4
      %s1440 = int_to_ptr.hbm [resolvable:$true] %s1439
      %1442 = dma.vmem_to_hbm [thread:$0]  %s1438, 32, %s1440, [#allocation4]
    $region41: #{tpu_custom_call.1} parent=1 // pred_fallthru
      _
    // Predicated region
    $region42: #{tpu_custom_call.1} parent=1 // pred_check
      _
    $region43: #{tpu_custom_call.1} parent=1 // pred_check_branch
      %1444 = sbr.rel (0) target = $region45
    $region44: #{tpu_custom_call.1} parent=1 // pred_region
      %1446 = dma.done [#allocation4], 32
    $region45: #{tpu_custom_call.1} parent=1 // pred_fallthru
      _
    %1447 = vsyncpa [#allocation3], 1
    %1448 = vsyncpa [#allocation6], 1
    %1449 = vsyncpa [#allocation4], 1

</llo_original>
